<compile_context>
chip_gen: v7x
topology: tpu7x:2x2x1
jax: 0.10.0
libtpu: 0.0.40
codegen_flags: <defaults>
</compile_context>

<pallas_src>
import jax
import jax.numpy as jnp
from jax import lax
from jax.experimental import pallas as pl
from jax.experimental.pallas import tpu as pltpu

# ------------------------- problem sizes (small) -------------------------
B = 2        # batch
S = 8        # sequence length
H = 32       # hidden size ("bert.config.hidden_size")
F = 4 * H    # FFN intermediate
R = 5        # number of RGCN relation types
V = 100      # vocab size for the stand-in embedding
Y = 4        # y_num (number of relation classes)

_INV_SQRT_H = 1.0 / (float(H) ** 0.5)


# =========================================================================
# One fused kernel: BERT block -> RGCN -> span pooling x2 -> fc + CE loss
# =========================================================================
def fused_kernel(spans_ref, labels_ref, emb_ref, graphs_ref,
                 wqkv_ref, wo_ref, w1_ref, b1_ref, w2_ref, b2_ref,
                 wrel_ref, wself_ref, brg_ref, watt_ref, batt_ref,
                 wfc_ref, bfc_ref,
                 logits_ref, loss_ref):
    # ------------------- "BERT" encoder block (stand-in) -------------------
    # TODO(synk): pretrained BertModel replaced by one attention+FFN block
    # (no LayerNorm, single head, tanh GELU) with the same [B,S,H] contract.
    x2 = emb_ref[...].reshape(B * S, H)                         # [16, 32]
    qkv = jnp.dot(x2, wqkv_ref[...], preferred_element_type=jnp.float32)
    q = qkv[:, 0 * H:1 * H].reshape(B, S, H)
    k = qkv[:, 1 * H:2 * H].reshape(B, S, H)
    v = qkv[:, 2 * H:3 * H].reshape(B, S, H)

    s = jnp.einsum("bqd,bkd->bqk", q, k,
                   preferred_element_type=jnp.float32) * _INV_SQRT_H
    m = jnp.max(s, axis=-1, keepdims=True)
    p = jnp.exp(s - m)
    p = p * pl.reciprocal(jnp.sum(p, axis=-1, keepdims=True), approx=True)
    attn = jnp.einsum("bqk,bkd->bqd", p, v,
                      preferred_element_type=jnp.float32).reshape(B * S, H)
    x2 = x2 + jnp.dot(attn, wo_ref[...], preferred_element_type=jnp.float32)

    h = jnp.dot(x2, w1_ref[...], preferred_element_type=jnp.float32) + b1_ref[...]
    h = jax.nn.gelu(h, approximate=True)
    x2 = x2 + jnp.dot(h, w2_ref[...], preferred_element_type=jnp.float32) + b2_ref[...]
    bert_enc = x2.reshape(B, S, H)

    # -------- RGCN stand-in: relu(h@Wself + sum_r A_r@h@W_r + b) -----------
    # All relation weights stacked along N -> one [H, R*H] matmul; relation
    # reduction unrolled in-kernel (no grid axis).
    hw = jnp.dot(x2, wrel_ref[...], preferred_element_type=jnp.float32)   # [16, R*H]
    acc = jnp.dot(x2, wself_ref[...],
                  preferred_element_type=jnp.float32).reshape(B, S, H)
    g = graphs_ref[...]                                         # [B, R, S, S]
    for r in range(R):                                          # static unroll
        hw_r = hw[:, r * H:(r + 1) * H].reshape(B, S, H)
        acc = acc + jnp.einsum("bij,bjh->bih", g[:, r], hw_r,
                               preferred_element_type=jnp.float32)
    rgcn_out = jnp.maximum(acc + brg_ref[...], 0.0)
    enc = bert_enc + rgcn_out                                   # [B, S, H]

    # ------ SelfAttentiveSpanExtractor for both spans -> temp [B, 2H] ------
    att = jnp.sum(enc * watt_ref[...], axis=-1) + batt_ref[...]   # [B, S]
    idx = lax.broadcasted_iota(jnp.int32, (1, S), 1)
    rows = []
    for b in range(B):                                          # static unroll
        pooled = []
        for e in range(2):                                      # e1, e2
            start = spans_ref[b, 2 * e]                         # SMEM scalars
            end = spans_ref[b, 2 * e + 1]
            mask = (idx >= start) & (idx <= end)                # [1, S]
            sc = jnp.where(mask, att[b:b + 1, :], jnp.float32(-1e9))
            mx = jnp.max(sc, axis=-1, keepdims=True)
            pe = jnp.where(mask, jnp.exp(sc - mx), 0.0)
            pe = pe * pl.reciprocal(jnp.sum(pe, axis=-1, keepdims=True),
                                    approx=True)
            pooled.append(jnp.dot(pe, enc[b],
                                  preferred_element_type=jnp.float32))  # [1, H]
        rows.append(jnp.concatenate(pooled, axis=-1))           # [1, 2H]
    temp = jnp.concatenate(rows, axis=0)                        # [B, 2H]

    # ----------- fc head + CrossEntropyLoss(ignore_index=-1, mean) ---------
    logits = jnp.dot(temp, wfc_ref[...],
                     preferred_element_type=jnp.float32) + bfc_ref[...]
    logits_ref[...] = logits

    labels = labels_ref[...]                                    # [B, 1] int32
    mx = jnp.max(logits, axis=-1, keepdims=True)
    lse = mx + jnp.log(jnp.sum(jnp.exp(logits - mx), axis=-1, keepdims=True))
    cls_idx = lax.broadcasted_iota(jnp.int32, (B, Y), 1)
    onehot = (cls_idx == labels).astype(jnp.float32)
    picked = jnp.sum(onehot * logits, axis=-1, keepdims=True)
    valid = (labels >= 0).astype(jnp.float32)
    nll = (lse - picked) * valid                                # [B, 1]
    total = jnp.sum(nll, axis=(0, 1), keepdims=True)            # [1, 1]
    # TODO(synk): PyTorch returns NaN when every label == ignore_index; here
    # the count is clamped to 1 so the loss is 0 in that corner case.
    count = jnp.maximum(jnp.sum(valid, axis=(0, 1), keepdims=True), 1.0)
    loss_ref[...] = total / count


_VMEM = pl.BlockSpec(memory_space=pltpu.MemorySpace.VMEM)
_SMEM = pl.BlockSpec(memory_space=pltpu.MemorySpace.SMEM)


def fused_forward(spans, labels, emb, graphs, params):
    bp, rp, sp = params["bert"], params["rgcn"], params["span"]
    return pl.pallas_call(
        fused_kernel,
        out_shape=(jax.ShapeDtypeStruct((B, Y), jnp.float32),
                   jax.ShapeDtypeStruct((1, 1), jnp.float32)),
        in_specs=[_SMEM] + [_VMEM] * 16,
        out_specs=(_VMEM, _VMEM),
    )(spans, labels, emb, graphs,
      bp["wqkv"], bp["wo"], bp["w1"], bp["b1"], bp["w2"], bp["b2"],
      rp["w_rel"], rp["w_self"], rp["b"],
      sp["w_att"], sp["b_att"],
      params["w_fc"], params["b_fc"])


# =========================================================================
# Parameters and top-level forward (embedding gather stays in plain JAX)
# =========================================================================
def init_params(key):
    ks = jax.random.split(key, 12)
    n = lambda k, shape, s=0.05: (s * jax.random.normal(k, shape)).astype(jnp.float32)
    return {
        "tok_emb": n(ks[0], (V, H)),
        "pos_emb": n(ks[1], (S, H)),
        "bert": {
            "wqkv": n(ks[2], (H, 3 * H)),   # fused [Wq | Wk | Wv]
            "wo": n(ks[3], (H, H)),
            "w1": n(ks[4], (H, F)), "b1": jnp.zeros((1, F), jnp.float32),
            "w2": n(ks[5], (F, H)), "b2": jnp.zeros((1, H), jnp.float32),
        },
        "rgcn": {
            "w_rel": n(ks[6], (H, R * H)),  # [W_0 | ... | W_{R-1}] along N
            "w_self": n(ks[7], (H, H)),
            "b": jnp.zeros((1, H), jnp.float32),
        },
        "span": {
            "w_att": n(ks[8], (1, H)),
            "b_att": jnp.zeros((1, 1), jnp.float32),
        },
        "w_fc": n(ks[9], (2 * H, Y)),
        "b_fc": jnp.zeros((1, Y), jnp.float32),
    }


@jax.jit
def bert_re_graph_forward(params, data_x, data_e1, data_e2, data_y, graphs):
    # TODO(synk): embedding lookup (gather) kept in plain-JAX glue.
    emb = params["tok_emb"][data_x] + params["pos_emb"][None, :, :]        # [B,S,H]
    spans = jnp.concatenate([data_e1, data_e2], axis=1).astype(jnp.int32)  # [B,4]
    labels = data_y.reshape(B, 1).astype(jnp.int32)
    logits, loss = fused_forward(spans, labels, emb, graphs, params)
    return logits, loss[0, 0]


if __name__ == "__main__":
    key = jax.random.PRNGKey(0)
    k_par, k_x, k_g = jax.random.split(key, 3)

    params = init_params(k_par)

    data_x = jax.random.randint(k_x, (B, S), 0, V, dtype=jnp.int32)
    data_e1 = jnp.array([[1, 3], [0, 2]], dtype=jnp.int32)   # [B,2] (start,end)
    data_e2 = jnp.array([[4, 6], [5, 7]], dtype=jnp.int32)
    data_y = jnp.array([2, -1], dtype=jnp.int32)             # -1 is ignored

    # per-relation row-normalized adjacency (edge types pre-folded into the
    # relation axis; stands in for (graphs, edge_types) of the PyTorch module)
    adj = (jax.random.uniform(k_g, (B, R, S, S)) < 0.3).astype(jnp.float32)
    graphs = adj / jnp.maximum(jnp.sum(adj, axis=-1, keepdims=True), 1.0)

    logits, loss = bert_re_graph_forward(params, data_x, data_e1, data_e2,
                                         data_y, graphs)
    jax.block_until_ready((logits, loss))
    assert logits.shape == (B, Y) and loss.shape == ()
    assert bool(jnp.all(jnp.isfinite(logits))) and bool(jnp.isfinite(loss))
    print("KERNEL_OK")
</pallas_src>

<mosaic_0001>
module attributes {stable_mosaic.version = 11 : i64} {
  func.func @fused_kernel(%arg0: memref<2x4xi32, #tpu.memory_space<smem>>, %arg1: memref<2x1xi32, #tpu.memory_space<vmem>>, %arg2: memref<2x8x32xf32, #tpu.memory_space<vmem>>, %arg3: memref<2x5x8x8xf32, #tpu.memory_space<vmem>>, %arg4: memref<32x96xf32, #tpu.memory_space<vmem>>, %arg5: memref<32x32xf32, #tpu.memory_space<vmem>>, %arg6: memref<32x128xf32, #tpu.memory_space<vmem>>, %arg7: memref<1x128xf32, #tpu.memory_space<vmem>>, %arg8: memref<128x32xf32, #tpu.memory_space<vmem>>, %arg9: memref<1x32xf32, #tpu.memory_space<vmem>>, %arg10: memref<32x160xf32, #tpu.memory_space<vmem>>, %arg11: memref<32x32xf32, #tpu.memory_space<vmem>>, %arg12: memref<1x32xf32, #tpu.memory_space<vmem>>, %arg13: memref<1x32xf32, #tpu.memory_space<vmem>>, %arg14: memref<1x1xf32, #tpu.memory_space<vmem>>, %arg15: memref<64x4xf32, #tpu.memory_space<vmem>>, %arg16: memref<1x4xf32, #tpu.memory_space<vmem>>, %arg17: memref<2x4xf32, #tpu.memory_space<vmem>>, %arg18: memref<1x1xf32, #tpu.memory_space<vmem>>) attributes {dimension_semantics = [], scalar_prefetch = 0 : i64, scratch_operands = 0 : i64, tpu.core_type = #tpu.core_type<tc>} {
    %c0 = arith.constant 0 : index
    %c0_0 = arith.constant 0 : index
    %c0_1 = arith.constant 0 : index
    %0 = vector.load %arg2[%c0, %c0_0, %c0_1] : memref<2x8x32xf32, #tpu.memory_space<vmem>>, vector<2x8x32xf32>
    %1 = vector.shape_cast %0 : vector<2x8x32xf32> to vector<16x32xf32>
    %c0_2 = arith.constant 0 : index
    %c0_3 = arith.constant 0 : index
    %2 = vector.load %arg4[%c0_2, %c0_3] : memref<32x96xf32, #tpu.memory_space<vmem>>, vector<32x96xf32>
    %cst = arith.constant dense<0.000000e+00> : vector<16x96xf32>
    %3 = tpu.matmul %1, %2, %cst {dimension_numbers = #tpu.dot_dimension_numbers<[1], [0], [0], [1], [0, 0, 1, 1], [], []>} : vector<16x32xf32>, vector<32x96xf32>, vector<16x96xf32> -> vector<16x96xf32>
    %4 = vector.extract_strided_slice %3 {offsets = [0, 0], sizes = [16, 32], strides = [1, 1]} : vector<16x96xf32> to vector<16x32xf32>
    %5 = vector.shape_cast %4 : vector<16x32xf32> to vector<2x8x32xf32>
    %6 = vector.extract_strided_slice %3 {offsets = [0, 32], sizes = [16, 32], strides = [1, 1]} : vector<16x96xf32> to vector<16x32xf32>
    %7 = vector.shape_cast %6 : vector<16x32xf32> to vector<2x8x32xf32>
    %8 = vector.extract_strided_slice %3 {offsets = [0, 64], sizes = [16, 32], strides = [1, 1]} : vector<16x96xf32> to vector<16x32xf32>
    %9 = vector.shape_cast %8 : vector<16x32xf32> to vector<2x8x32xf32>
    "tpu.trace_start"() <{level = 10 : i32, message = "bqd,bkd->bqk"}> : () -> ()
    %cst_4 = arith.constant dense<0.000000e+00> : vector<2x8x8xf32>
    %10 = tpu.matmul %5, %7, %cst_4 {dimension_numbers = #tpu.dot_dimension_numbers<[2], [2], [1], [1], [0, 0, 0, 1, 1, 1], [0], [0]>} : vector<2x8x32xf32>, vector<2x8x32xf32>, vector<2x8x8xf32> -> vector<2x8x8xf32>
    "tpu.trace_stop"() : () -> ()
    %cst_5 = arith.constant 0.176776692 : f32
    %11 = vector.broadcast %cst_5 : f32 to vector<2x8x8xf32>
    %12 = arith.mulf %10, %11 : vector<2x8x8xf32>
    %cst_6 = arith.constant dense<0xFF800000> : vector<2x8xf32>
    %13 = vector.multi_reduction <maximumf>, %12, %cst_6 [2] : vector<2x8x8xf32> to vector<2x8xf32>
    %14 = vector.shape_cast %13 : vector<2x8xf32> to vector<2x8x1xf32>
    %15 = vector.broadcast %14 : vector<2x8x1xf32> to vector<2x8x8xf32>
    %16 = arith.subf %12, %15 : vector<2x8x8xf32>
    %17 = math.exp %16 : vector<2x8x8xf32>
    %cst_7 = arith.constant dense<0.000000e+00> : vector<2x8xf32>
    %18 = vector.multi_reduction <add>, %17, %cst_7 [2] : vector<2x8x8xf32> to vector<2x8xf32>
    %19 = vector.shape_cast %18 : vector<2x8xf32> to vector<2x8x1xf32>
    %20 = tpu.reciprocal %19 {approx = true} : vector<2x8x1xf32> -> vector<2x8x1xf32>
    %21 = vector.broadcast %20 : vector<2x8x1xf32> to vector<2x8x8xf32>
    %22 = arith.mulf %17, %21 : vector<2x8x8xf32>
    "tpu.trace_start"() <{level = 10 : i32, message = "bqk,bkd->bqd"}> : () -> ()
    %cst_8 = arith.constant dense<0.000000e+00> : vector<2x8x32xf32>
    %23 = tpu.matmul %22, %9, %cst_8 {dimension_numbers = #tpu.dot_dimension_numbers<[2], [1], [1], [2], [0, 0, 0, 1, 1, 2], [0], [0]>} : vector<2x8x8xf32>, vector<2x8x32xf32>, vector<2x8x32xf32> -> vector<2x8x32xf32>
    "tpu.trace_stop"() : () -> ()
    %24 = vector.shape_cast %23 : vector<2x8x32xf32> to vector<16x32xf32>
    %c0_9 = arith.constant 0 : index
    %c0_10 = arith.constant 0 : index
    %25 = vector.load %arg5[%c0_9, %c0_10] : memref<32x32xf32, #tpu.memory_space<vmem>>, vector<32x32xf32>
    %cst_11 = arith.constant dense<0.000000e+00> : vector<16x32xf32>
    %26 = tpu.matmul %24, %25, %cst_11 {dimension_numbers = #tpu.dot_dimension_numbers<[1], [0], [0], [1], [0, 0, 1, 1], [], []>} : vector<16x32xf32>, vector<32x32xf32>, vector<16x32xf32> -> vector<16x32xf32>
    %27 = arith.addf %1, %26 : vector<16x32xf32>
    %c0_12 = arith.constant 0 : index
    %c0_13 = arith.constant 0 : index
    %28 = vector.load %arg6[%c0_12, %c0_13] : memref<32x128xf32, #tpu.memory_space<vmem>>, vector<32x128xf32>
    %cst_14 = arith.constant dense<0.000000e+00> : vector<16x128xf32>
    %29 = tpu.matmul %27, %28, %cst_14 {dimension_numbers = #tpu.dot_dimension_numbers<[1], [0], [0], [1], [0, 0, 1, 1], [], []>} : vector<16x32xf32>, vector<32x128xf32>, vector<16x128xf32> -> vector<16x128xf32>
    %c0_15 = arith.constant 0 : index
    %c0_16 = arith.constant 0 : index
    %30 = vector.load %arg7[%c0_15, %c0_16] : memref<1x128xf32, #tpu.memory_space<vmem>>, vector<1x128xf32>
    %31 = vector.broadcast %30 : vector<1x128xf32> to vector<16x128xf32>
    %32 = arith.addf %29, %31 : vector<16x128xf32>
    %33 = arith.mulf %32, %32 : vector<16x128xf32>
    %34 = arith.mulf %32, %33 : vector<16x128xf32>
    %cst_17 = arith.constant 4.471500e-02 : f32
    %35 = vector.broadcast %cst_17 : f32 to vector<16x128xf32>
    %36 = arith.mulf %35, %34 : vector<16x128xf32>
    %37 = arith.addf %32, %36 : vector<16x128xf32>
    %cst_18 = arith.constant 0.797884583 : f32
    %38 = vector.broadcast %cst_18 : f32 to vector<16x128xf32>
    %39 = arith.mulf %38, %37 : vector<16x128xf32>
    %40 = math.tanh %39 : vector<16x128xf32>
    %cst_19 = arith.constant 1.000000e+00 : f32
    %41 = vector.broadcast %cst_19 : f32 to vector<16x128xf32>
    %42 = arith.addf %41, %40 : vector<16x128xf32>
    %cst_20 = arith.constant 5.000000e-01 : f32
    %43 = vector.broadcast %cst_20 : f32 to vector<16x128xf32>
    %44 = arith.mulf %43, %42 : vector<16x128xf32>
    %45 = arith.mulf %32, %44 : vector<16x128xf32>
    %c0_21 = arith.constant 0 : index
    %c0_22 = arith.constant 0 : index
    %46 = vector.load %arg8[%c0_21, %c0_22] : memref<128x32xf32, #tpu.memory_space<vmem>>, vector<128x32xf32>
    %cst_23 = arith.constant dense<0.000000e+00> : vector<16x32xf32>
    %47 = tpu.matmul %45, %46, %cst_23 {dimension_numbers = #tpu.dot_dimension_numbers<[1], [0], [0], [1], [0, 0, 1, 1], [], []>} : vector<16x128xf32>, vector<128x32xf32>, vector<16x32xf32> -> vector<16x32xf32>
    %48 = arith.addf %27, %47 : vector<16x32xf32>
    %c0_24 = arith.constant 0 : index
    %c0_25 = arith.constant 0 : index
    %49 = vector.load %arg9[%c0_24, %c0_25] : memref<1x32xf32, #tpu.memory_space<vmem>>, vector<1x32xf32>
    %50 = vector.broadcast %49 : vector<1x32xf32> to vector<16x32xf32>
    %51 = arith.addf %48, %50 : vector<16x32xf32>
    %52 = vector.shape_cast %51 : vector<16x32xf32> to vector<2x8x32xf32>
    %c0_26 = arith.constant 0 : index
    %c0_27 = arith.constant 0 : index
    %53 = vector.load %arg10[%c0_26, %c0_27] : memref<32x160xf32, #tpu.memory_space<vmem>>, vector<32x160xf32>
    %cst_28 = arith.constant dense<0.000000e+00> : vector<16x160xf32>
    %54 = tpu.matmul %51, %53, %cst_28 {dimension_numbers = #tpu.dot_dimension_numbers<[1], [0], [0], [1], [0, 0, 1, 1], [], []>} : vector<16x32xf32>, vector<32x160xf32>, vector<16x160xf32> -> vector<16x160xf32>
    %c0_29 = arith.constant 0 : index
    %c0_30 = arith.constant 0 : index
    %55 = vector.load %arg11[%c0_29, %c0_30] : memref<32x32xf32, #tpu.memory_space<vmem>>, vector<32x32xf32>
    %cst_31 = arith.constant dense<0.000000e+00> : vector<16x32xf32>
    %56 = tpu.matmul %51, %55, %cst_31 {dimension_numbers = #tpu.dot_dimension_numbers<[1], [0], [0], [1], [0, 0, 1, 1], [], []>} : vector<16x32xf32>, vector<32x32xf32>, vector<16x32xf32> -> vector<16x32xf32>
    %57 = vector.shape_cast %56 : vector<16x32xf32> to vector<2x8x32xf32>
    %c0_32 = arith.constant 0 : index
    %c0_33 = arith.constant 0 : index
    %c0_34 = arith.constant 0 : index
    %c0_35 = arith.constant 0 : index
    %58 = vector.load %arg3[%c0_32, %c0_33, %c0_34, %c0_35] : memref<2x5x8x8xf32, #tpu.memory_space<vmem>>, vector<2x5x8x8xf32>
    %59 = vector.extract_strided_slice %54 {offsets = [0, 0], sizes = [16, 32], strides = [1, 1]} : vector<16x160xf32> to vector<16x32xf32>
    %60 = vector.shape_cast %59 : vector<16x32xf32> to vector<2x8x32xf32>
    %61 = vector.extract_strided_slice %58 {offsets = [0, 0, 0, 0], sizes = [2, 1, 8, 8], strides = [1, 1, 1, 1]} : vector<2x5x8x8xf32> to vector<2x1x8x8xf32>
    %62 = vector.shape_cast %61 : vector<2x1x8x8xf32> to vector<2x8x8xf32>
    "tpu.trace_start"() <{level = 10 : i32, message = "bij,bjh->bih"}> : () -> ()
    %cst_36 = arith.constant dense<0.000000e+00> : vector<2x8x32xf32>
    %63 = tpu.matmul %62, %60, %cst_36 {dimension_numbers = #tpu.dot_dimension_numbers<[2], [1], [1], [2], [0, 0, 0, 1, 1, 2], [0], [0]>} : vector<2x8x8xf32>, vector<2x8x32xf32>, vector<2x8x32xf32> -> vector<2x8x32xf32>
    "tpu.trace_stop"() : () -> ()
    %64 = arith.addf %57, %63 : vector<2x8x32xf32>
    %65 = vector.extract_strided_slice %54 {offsets = [0, 32], sizes = [16, 32], strides = [1, 1]} : vector<16x160xf32> to vector<16x32xf32>
    %66 = vector.shape_cast %65 : vector<16x32xf32> to vector<2x8x32xf32>
    %67 = vector.extract_strided_slice %58 {offsets = [0, 1, 0, 0], sizes = [2, 1, 8, 8], strides = [1, 1, 1, 1]} : vector<2x5x8x8xf32> to vector<2x1x8x8xf32>
    %68 = vector.shape_cast %67 : vector<2x1x8x8xf32> to vector<2x8x8xf32>
    "tpu.trace_start"() <{level = 10 : i32, message = "bij,bjh->bih"}> : () -> ()
    %cst_37 = arith.constant dense<0.000000e+00> : vector<2x8x32xf32>
    %69 = tpu.matmul %68, %66, %cst_37 {dimension_numbers = #tpu.dot_dimension_numbers<[2], [1], [1], [2], [0, 0, 0, 1, 1, 2], [0], [0]>} : vector<2x8x8xf32>, vector<2x8x32xf32>, vector<2x8x32xf32> -> vector<2x8x32xf32>
    "tpu.trace_stop"() : () -> ()
    %70 = arith.addf %64, %69 : vector<2x8x32xf32>
    %71 = vector.extract_strided_slice %54 {offsets = [0, 64], sizes = [16, 32], strides = [1, 1]} : vector<16x160xf32> to vector<16x32xf32>
    %72 = vector.shape_cast %71 : vector<16x32xf32> to vector<2x8x32xf32>
    %73 = vector.extract_strided_slice %58 {offsets = [0, 2, 0, 0], sizes = [2, 1, 8, 8], strides = [1, 1, 1, 1]} : vector<2x5x8x8xf32> to vector<2x1x8x8xf32>
    %74 = vector.shape_cast %73 : vector<2x1x8x8xf32> to vector<2x8x8xf32>
    "tpu.trace_start"() <{level = 10 : i32, message = "bij,bjh->bih"}> : () -> ()
    %cst_38 = arith.constant dense<0.000000e+00> : vector<2x8x32xf32>
    %75 = tpu.matmul %74, %72, %cst_38 {dimension_numbers = #tpu.dot_dimension_numbers<[2], [1], [1], [2], [0, 0, 0, 1, 1, 2], [0], [0]>} : vector<2x8x8xf32>, vector<2x8x32xf32>, vector<2x8x32xf32> -> vector<2x8x32xf32>
    "tpu.trace_stop"() : () -> ()
    %76 = arith.addf %70, %75 : vector<2x8x32xf32>
    %77 = vector.extract_strided_slice %54 {offsets = [0, 96], sizes = [16, 32], strides = [1, 1]} : vector<16x160xf32> to vector<16x32xf32>
    %78 = vector.shape_cast %77 : vector<16x32xf32> to vector<2x8x32xf32>
    %79 = vector.extract_strided_slice %58 {offsets = [0, 3, 0, 0], sizes = [2, 1, 8, 8], strides = [1, 1, 1, 1]} : vector<2x5x8x8xf32> to vector<2x1x8x8xf32>
    %80 = vector.shape_cast %79 : vector<2x1x8x8xf32> to vector<2x8x8xf32>
    "tpu.trace_start"() <{level = 10 : i32, message = "bij,bjh->bih"}> : () -> ()
    %cst_39 = arith.constant dense<0.000000e+00> : vector<2x8x32xf32>
    %81 = tpu.matmul %80, %78, %cst_39 {dimension_numbers = #tpu.dot_dimension_numbers<[2], [1], [1], [2], [0, 0, 0, 1, 1, 2], [0], [0]>} : vector<2x8x8xf32>, vector<2x8x32xf32>, vector<2x8x32xf32> -> vector<2x8x32xf32>
    "tpu.trace_stop"() : () -> ()
    %82 = arith.addf %76, %81 : vector<2x8x32xf32>
    %83 = vector.extract_strided_slice %54 {offsets = [0, 128], sizes = [16, 32], strides = [1, 1]} : vector<16x160xf32> to vector<16x32xf32>
    %84 = vector.shape_cast %83 : vector<16x32xf32> to vector<2x8x32xf32>
    %85 = vector.extract_strided_slice %58 {offsets = [0, 4, 0, 0], sizes = [2, 1, 8, 8], strides = [1, 1, 1, 1]} : vector<2x5x8x8xf32> to vector<2x1x8x8xf32>
    %86 = vector.shape_cast %85 : vector<2x1x8x8xf32> to vector<2x8x8xf32>
    "tpu.trace_start"() <{level = 10 : i32, message = "bij,bjh->bih"}> : () -> ()
    %cst_40 = arith.constant dense<0.000000e+00> : vector<2x8x32xf32>
    %87 = tpu.matmul %86, %84, %cst_40 {dimension_numbers = #tpu.dot_dimension_numbers<[2], [1], [1], [2], [0, 0, 0, 1, 1, 2], [0], [0]>} : vector<2x8x8xf32>, vector<2x8x32xf32>, vector<2x8x32xf32> -> vector<2x8x32xf32>
    "tpu.trace_stop"() : () -> ()
    %88 = arith.addf %82, %87 : vector<2x8x32xf32>
    %c0_41 = arith.constant 0 : index
    %c0_42 = arith.constant 0 : index
    %89 = vector.load %arg12[%c0_41, %c0_42] : memref<1x32xf32, #tpu.memory_space<vmem>>, vector<1x32xf32>
    %90 = vector.shape_cast %89 : vector<1x32xf32> to vector<1x1x32xf32>
    %91 = vector.broadcast %90 : vector<1x1x32xf32> to vector<2x8x32xf32>
    %92 = arith.addf %88, %91 : vector<2x8x32xf32>
    %cst_43 = arith.constant 0.000000e+00 : f32
    %93 = vector.broadcast %cst_43 : f32 to vector<2x8x32xf32>
    %94 = arith.maximumf %92, %93 : vector<2x8x32xf32>
    %95 = arith.addf %52, %94 : vector<2x8x32xf32>
    %c0_44 = arith.constant 0 : index
    %c0_45 = arith.constant 0 : index
    %96 = vector.load %arg13[%c0_44, %c0_45] : memref<1x32xf32, #tpu.memory_space<vmem>>, vector<1x32xf32>
    %97 = vector.shape_cast %96 : vector<1x32xf32> to vector<1x1x32xf32>
    %98 = vector.broadcast %97 : vector<1x1x32xf32> to vector<2x8x32xf32>
    %99 = arith.mulf %95, %98 : vector<2x8x32xf32>
    %cst_46 = arith.constant dense<0.000000e+00> : vector<2x8xf32>
    %100 = vector.multi_reduction <add>, %99, %cst_46 [2] : vector<2x8x32xf32> to vector<2x8xf32>
    %c0_47 = arith.constant 0 : index
    %c0_48 = arith.constant 0 : index
    %101 = vector.load %arg14[%c0_47, %c0_48] : memref<1x1xf32, #tpu.memory_space<vmem>>, vector<1x1xf32>
    %102 = vector.broadcast %101 : vector<1x1xf32> to vector<2x8xf32>
    %103 = arith.addf %100, %102 : vector<2x8xf32>
    %104 = tpu.iota {dimensions = array<i32: 1>} : vector<1x8xi32>
    %c0_49 = arith.constant 0 : index
    %c0_50 = arith.constant 0 : index
    %105 = memref.load %arg0[%c0_49, %c0_50] : memref<2x4xi32, #tpu.memory_space<smem>>
    %c0_51 = arith.constant 0 : index
    %c1 = arith.constant 1 : index
    %106 = memref.load %arg0[%c0_51, %c1] : memref<2x4xi32, #tpu.memory_space<smem>>
    %107 = vector.broadcast %105 : i32 to vector<1x8xi32>
    %108 = arith.cmpi sge, %104, %107 : vector<1x8xi32>
    %109 = vector.broadcast %106 : i32 to vector<1x8xi32>
    %110 = arith.cmpi sle, %104, %109 : vector<1x8xi32>
    %111 = arith.andi %108, %110 : vector<1x8xi1>
    %112 = vector.extract_strided_slice %103 {offsets = [0, 0], sizes = [1, 8], strides = [1, 1]} : vector<2x8xf32> to vector<1x8xf32>
    %cst_52 = arith.constant -1.000000e+09 : f32
    %113 = vector.broadcast %cst_52 : f32 to vector<1x8xf32>
    %114 = arith.select %111, %112, %113 : vector<1x8xi1>, vector<1x8xf32>
    %cst_53 = arith.constant dense<0xFF800000> : vector<1xf32>
    %115 = vector.multi_reduction <maximumf>, %114, %cst_53 [1] : vector<1x8xf32> to vector<1xf32>
    %116 = vector.shape_cast %115 : vector<1xf32> to vector<1x1xf32>
    %117 = vector.broadcast %116 : vector<1x1xf32> to vector<1x8xf32>
    %118 = arith.subf %114, %117 : vector<1x8xf32>
    %119 = math.exp %118 : vector<1x8xf32>
    %cst_54 = arith.constant 0.000000e+00 : f32
    %120 = vector.broadcast %cst_54 : f32 to vector<1x8xf32>
    %121 = arith.select %111, %119, %120 : vector<1x8xi1>, vector<1x8xf32>
    %cst_55 = arith.constant dense<0.000000e+00> : vector<1xf32>
    %122 = vector.multi_reduction <add>, %121, %cst_55 [1] : vector<1x8xf32> to vector<1xf32>
    %123 = vector.shape_cast %122 : vector<1xf32> to vector<1x1xf32>
    %124 = tpu.reciprocal %123 {approx = true} : vector<1x1xf32> -> vector<1x1xf32>
    %125 = vector.broadcast %124 : vector<1x1xf32> to vector<1x8xf32>
    %126 = arith.mulf %121, %125 : vector<1x8xf32>
    %127 = vector.extract_strided_slice %95 {offsets = [0, 0, 0], sizes = [1, 8, 32], strides = [1, 1, 1]} : vector<2x8x32xf32> to vector<1x8x32xf32>
    %128 = vector.shape_cast %127 : vector<1x8x32xf32> to vector<8x32xf32>
    %cst_56 = arith.constant dense<0.000000e+00> : vector<1x32xf32>
    %129 = tpu.matmul %126, %128, %cst_56 {dimension_numbers = #tpu.dot_dimension_numbers<[1], [0], [0], [1], [0, 0, 1, 1], [], []>} : vector<1x8xf32>, vector<8x32xf32>, vector<1x32xf32> -> vector<1x32xf32>
    %c0_57 = arith.constant 0 : index
    %c2 = arith.constant 2 : index
    %130 = memref.load %arg0[%c0_57, %c2] : memref<2x4xi32, #tpu.memory_space<smem>>
    %c0_58 = arith.constant 0 : index
    %c3 = arith.constant 3 : index
    %131 = memref.load %arg0[%c0_58, %c3] : memref<2x4xi32, #tpu.memory_space<smem>>
    %132 = vector.broadcast %130 : i32 to vector<1x8xi32>
    %133 = arith.cmpi sge, %104, %132 : vector<1x8xi32>
    %134 = vector.broadcast %131 : i32 to vector<1x8xi32>
    %135 = arith.cmpi sle, %104, %134 : vector<1x8xi32>
    %136 = arith.andi %133, %135 : vector<1x8xi1>
    %137 = vector.extract_strided_slice %103 {offsets = [0, 0], sizes = [1, 8], strides = [1, 1]} : vector<2x8xf32> to vector<1x8xf32>
    %cst_59 = arith.constant -1.000000e+09 : f32
    %138 = vector.broadcast %cst_59 : f32 to vector<1x8xf32>
    %139 = arith.select %136, %137, %138 : vector<1x8xi1>, vector<1x8xf32>
    %cst_60 = arith.constant dense<0xFF800000> : vector<1xf32>
    %140 = vector.multi_reduction <maximumf>, %139, %cst_60 [1] : vector<1x8xf32> to vector<1xf32>
    %141 = vector.shape_cast %140 : vector<1xf32> to vector<1x1xf32>
    %142 = vector.broadcast %141 : vector<1x1xf32> to vector<1x8xf32>
    %143 = arith.subf %139, %142 : vector<1x8xf32>
    %144 = math.exp %143 : vector<1x8xf32>
    %cst_61 = arith.constant 0.000000e+00 : f32
    %145 = vector.broadcast %cst_61 : f32 to vector<1x8xf32>
    %146 = arith.select %136, %144, %145 : vector<1x8xi1>, vector<1x8xf32>
    %cst_62 = arith.constant dense<0.000000e+00> : vector<1xf32>
    %147 = vector.multi_reduction <add>, %146, %cst_62 [1] : vector<1x8xf32> to vector<1xf32>
    %148 = vector.shape_cast %147 : vector<1xf32> to vector<1x1xf32>
    %149 = tpu.reciprocal %148 {approx = true} : vector<1x1xf32> -> vector<1x1xf32>
    %150 = vector.broadcast %149 : vector<1x1xf32> to vector<1x8xf32>
    %151 = arith.mulf %146, %150 : vector<1x8xf32>
    %152 = vector.extract_strided_slice %95 {offsets = [0, 0, 0], sizes = [1, 8, 32], strides = [1, 1, 1]} : vector<2x8x32xf32> to vector<1x8x32xf32>
    %153 = vector.shape_cast %152 : vector<1x8x32xf32> to vector<8x32xf32>
    %cst_63 = arith.constant dense<0.000000e+00> : vector<1x32xf32>
    %154 = tpu.matmul %151, %153, %cst_63 {dimension_numbers = #tpu.dot_dimension_numbers<[1], [0], [0], [1], [0, 0, 1, 1], [], []>} : vector<1x8xf32>, vector<8x32xf32>, vector<1x32xf32> -> vector<1x32xf32>
    %155 = tpu.concatenate %129, %154 in 1 : vector<1x32xf32>, vector<1x32xf32> -> vector<1x64xf32>
    %c1_64 = arith.constant 1 : index
    %c0_65 = arith.constant 0 : index
    %156 = memref.load %arg0[%c1_64, %c0_65] : memref<2x4xi32, #tpu.memory_space<smem>>
    %c1_66 = arith.constant 1 : index
    %c1_67 = arith.constant 1 : index
    %157 = memref.load %arg0[%c1_66, %c1_67] : memref<2x4xi32, #tpu.memory_space<smem>>
    %158 = vector.broadcast %156 : i32 to vector<1x8xi32>
    %159 = arith.cmpi sge, %104, %158 : vector<1x8xi32>
    %160 = vector.broadcast %157 : i32 to vector<1x8xi32>
    %161 = arith.cmpi sle, %104, %160 : vector<1x8xi32>
    %162 = arith.andi %159, %161 : vector<1x8xi1>
    %163 = vector.extract_strided_slice %103 {offsets = [1, 0], sizes = [1, 8], strides = [1, 1]} : vector<2x8xf32> to vector<1x8xf32>
    %cst_68 = arith.constant -1.000000e+09 : f32
    %164 = vector.broadcast %cst_68 : f32 to vector<1x8xf32>
    %165 = arith.select %162, %163, %164 : vector<1x8xi1>, vector<1x8xf32>
    %cst_69 = arith.constant dense<0xFF800000> : vector<1xf32>
    %166 = vector.multi_reduction <maximumf>, %165, %cst_69 [1] : vector<1x8xf32> to vector<1xf32>
    %167 = vector.shape_cast %166 : vector<1xf32> to vector<1x1xf32>
    %168 = vector.broadcast %167 : vector<1x1xf32> to vector<1x8xf32>
    %169 = arith.subf %165, %168 : vector<1x8xf32>
    %170 = math.exp %169 : vector<1x8xf32>
    %cst_70 = arith.constant 0.000000e+00 : f32
    %171 = vector.broadcast %cst_70 : f32 to vector<1x8xf32>
    %172 = arith.select %162, %170, %171 : vector<1x8xi1>, vector<1x8xf32>
    %cst_71 = arith.constant dense<0.000000e+00> : vector<1xf32>
    %173 = vector.multi_reduction <add>, %172, %cst_71 [1] : vector<1x8xf32> to vector<1xf32>
    %174 = vector.shape_cast %173 : vector<1xf32> to vector<1x1xf32>
    %175 = tpu.reciprocal %174 {approx = true} : vector<1x1xf32> -> vector<1x1xf32>
    %176 = vector.broadcast %175 : vector<1x1xf32> to vector<1x8xf32>
    %177 = arith.mulf %172, %176 : vector<1x8xf32>
    %178 = vector.extract_strided_slice %95 {offsets = [1, 0, 0], sizes = [1, 8, 32], strides = [1, 1, 1]} : vector<2x8x32xf32> to vector<1x8x32xf32>
    %179 = vector.shape_cast %178 : vector<1x8x32xf32> to vector<8x32xf32>
    %cst_72 = arith.constant dense<0.000000e+00> : vector<1x32xf32>
    %180 = tpu.matmul %177, %179, %cst_72 {dimension_numbers = #tpu.dot_dimension_numbers<[1], [0], [0], [1], [0, 0, 1, 1], [], []>} : vector<1x8xf32>, vector<8x32xf32>, vector<1x32xf32> -> vector<1x32xf32>
    %c1_73 = arith.constant 1 : index
    %c2_74 = arith.constant 2 : index
    %181 = memref.load %arg0[%c1_73, %c2_74] : memref<2x4xi32, #tpu.memory_space<smem>>
    %c1_75 = arith.constant 1 : index
    %c3_76 = arith.constant 3 : index
    %182 = memref.load %arg0[%c1_75, %c3_76] : memref<2x4xi32, #tpu.memory_space<smem>>
    %183 = vector.broadcast %181 : i32 to vector<1x8xi32>
    %184 = arith.cmpi sge, %104, %183 : vector<1x8xi32>
    %185 = vector.broadcast %182 : i32 to vector<1x8xi32>
    %186 = arith.cmpi sle, %104, %185 : vector<1x8xi32>
    %187 = arith.andi %184, %186 : vector<1x8xi1>
    %188 = vector.extract_strided_slice %103 {offsets = [1, 0], sizes = [1, 8], strides = [1, 1]} : vector<2x8xf32> to vector<1x8xf32>
    %cst_77 = arith.constant -1.000000e+09 : f32
    %189 = vector.broadcast %cst_77 : f32 to vector<1x8xf32>
    %190 = arith.select %187, %188, %189 : vector<1x8xi1>, vector<1x8xf32>
    %cst_78 = arith.constant dense<0xFF800000> : vector<1xf32>
    %191 = vector.multi_reduction <maximumf>, %190, %cst_78 [1] : vector<1x8xf32> to vector<1xf32>
    %192 = vector.shape_cast %191 : vector<1xf32> to vector<1x1xf32>
    %193 = vector.broadcast %192 : vector<1x1xf32> to vector<1x8xf32>
    %194 = arith.subf %190, %193 : vector<1x8xf32>
    %195 = math.exp %194 : vector<1x8xf32>
    %cst_79 = arith.constant 0.000000e+00 : f32
    %196 = vector.broadcast %cst_79 : f32 to vector<1x8xf32>
    %197 = arith.select %187, %195, %196 : vector<1x8xi1>, vector<1x8xf32>
    %cst_80 = arith.constant dense<0.000000e+00> : vector<1xf32>
    %198 = vector.multi_reduction <add>, %197, %cst_80 [1] : vector<1x8xf32> to vector<1xf32>
    %199 = vector.shape_cast %198 : vector<1xf32> to vector<1x1xf32>
    %200 = tpu.reciprocal %199 {approx = true} : vector<1x1xf32> -> vector<1x1xf32>
    %201 = vector.broadcast %200 : vector<1x1xf32> to vector<1x8xf32>
    %202 = arith.mulf %197, %201 : vector<1x8xf32>
    %203 = vector.extract_strided_slice %95 {offsets = [1, 0, 0], sizes = [1, 8, 32], strides = [1, 1, 1]} : vector<2x8x32xf32> to vector<1x8x32xf32>
    %204 = vector.shape_cast %203 : vector<1x8x32xf32> to vector<8x32xf32>
    %cst_81 = arith.constant dense<0.000000e+00> : vector<1x32xf32>
    %205 = tpu.matmul %202, %204, %cst_81 {dimension_numbers = #tpu.dot_dimension_numbers<[1], [0], [0], [1], [0, 0, 1, 1], [], []>} : vector<1x8xf32>, vector<8x32xf32>, vector<1x32xf32> -> vector<1x32xf32>
    %206 = tpu.concatenate %180, %205 in 1 : vector<1x32xf32>, vector<1x32xf32> -> vector<1x64xf32>
    %207 = tpu.concatenate %155, %206 in 0 : vector<1x64xf32>, vector<1x64xf32> -> vector<2x64xf32>
    %c0_82 = arith.constant 0 : index
    %c0_83 = arith.constant 0 : index
    %208 = vector.load %arg15[%c0_82, %c0_83] : memref<64x4xf32, #tpu.memory_space<vmem>>, vector<64x4xf32>
    %cst_84 = arith.constant dense<0.000000e+00> : vector<2x4xf32>
    %209 = tpu.matmul %207, %208, %cst_84 {dimension_numbers = #tpu.dot_dimension_numbers<[1], [0], [0], [1], [0, 0, 1, 1], [], []>} : vector<2x64xf32>, vector<64x4xf32>, vector<2x4xf32> -> vector<2x4xf32>
    %c0_85 = arith.constant 0 : index
    %c0_86 = arith.constant 0 : index
    %210 = vector.load %arg16[%c0_85, %c0_86] : memref<1x4xf32, #tpu.memory_space<vmem>>, vector<1x4xf32>
    %211 = vector.broadcast %210 : vector<1x4xf32> to vector<2x4xf32>
    %212 = arith.addf %209, %211 : vector<2x4xf32>
    %c0_87 = arith.constant 0 : index
    %c0_88 = arith.constant 0 : index
    %213 = vector.load %arg17[%c0_87, %c0_88] : memref<2x4xf32, #tpu.memory_space<vmem>>, vector<2x4xf32>
    tpu.vector_store %arg17[%c0_87, %c0_88], %212 {strides = array<i32>} : memref<2x4xf32, #tpu.memory_space<vmem>>, vector<2x4xf32>,
    %c0_89 = arith.constant 0 : index
    %c0_90 = arith.constant 0 : index
    %214 = vector.load %arg1[%c0_89, %c0_90] : memref<2x1xi32, #tpu.memory_space<vmem>>, vector<2x1xi32>
    %cst_91 = arith.constant dense<0xFF800000> : vector<2xf32>
    %215 = vector.multi_reduction <maximumf>, %212, %cst_91 [1] : vector<2x4xf32> to vector<2xf32>
    %216 = vector.shape_cast %215 : vector<2xf32> to vector<2x1xf32>
    %217 = vector.broadcast %216 : vector<2x1xf32> to vector<2x4xf32>
    %218 = arith.subf %212, %217 : vector<2x4xf32>
    %219 = math.exp %218 : vector<2x4xf32>
    %cst_92 = arith.constant dense<0.000000e+00> : vector<2xf32>
    %220 = vector.multi_reduction <add>, %219, %cst_92 [1] : vector<2x4xf32> to vector<2xf32>
    %221 = vector.shape_cast %220 : vector<2xf32> to vector<2x1xf32>
    %222 = math.log %221 : vector<2x1xf32>
    %223 = arith.addf %216, %222 : vector<2x1xf32>
    %224 = tpu.iota {dimensions = array<i32: 1>} : vector<2x4xi32>
    %225 = vector.broadcast %214 : vector<2x1xi32> to vector<2x4xi32>
    %226 = arith.cmpi eq, %224, %225 : vector<2x4xi32>
    %227 = arith.extui %226 : vector<2x4xi1> to vector<2x4xi32>
    %228 = arith.sitofp %227 : vector<2x4xi32> to vector<2x4xf32>
    %229 = arith.mulf %228, %212 : vector<2x4xf32>
    %cst_93 = arith.constant dense<0.000000e+00> : vector<2xf32>
    %230 = vector.multi_reduction <add>, %229, %cst_93 [1] : vector<2x4xf32> to vector<2xf32>
    %231 = vector.shape_cast %230 : vector<2xf32> to vector<2x1xf32>
    %c0_i32 = arith.constant 0 : i32
    %232 = vector.broadcast %c0_i32 : i32 to vector<2x1xi32>
    %233 = arith.cmpi sge, %214, %232 : vector<2x1xi32>
    %234 = arith.extui %233 : vector<2x1xi1> to vector<2x1xi32>
    %235 = arith.sitofp %234 : vector<2x1xi32> to vector<2x1xf32>
    %236 = arith.subf %223, %231 : vector<2x1xf32>
    %237 = arith.mulf %236, %235 : vector<2x1xf32>
    %238 = vector.shape_cast %237 : vector<2x1xf32> to vector<1x2x1xf32>
    %cst_94 = arith.constant dense<0.000000e+00> : vector<1xf32>
    %239 = vector.multi_reduction <add>, %238, %cst_94 [1, 2] : vector<1x2x1xf32> to vector<1xf32>
    %240 = vector.shape_cast %239 : vector<1xf32> to vector<1x1x1xf32>
    %241 = vector.extract %240[0, 0, 0] : f32 from vector<1x1x1xf32>
    %242 = vector.broadcast %241 : f32 to vector<1x1xf32>
    %243 = vector.shape_cast %235 : vector<2x1xf32> to vector<1x2x1xf32>
    %cst_95 = arith.constant dense<0.000000e+00> : vector<1xf32>
    %244 = vector.multi_reduction <add>, %243, %cst_95 [1, 2] : vector<1x2x1xf32> to vector<1xf32>
    %245 = vector.shape_cast %244 : vector<1xf32> to vector<1x1x1xf32>
    %246 = vector.extract %245[0, 0, 0] : f32 from vector<1x1x1xf32>
    %247 = vector.broadcast %246 : f32 to vector<1x1xf32>
    %cst_96 = arith.constant 1.000000e+00 : f32
    %248 = vector.broadcast %cst_96 : f32 to vector<1x1xf32>
    %249 = arith.maximumf %247, %248 : vector<1x1xf32>
    %250 = arith.divf %242, %249 : vector<1x1xf32>
    %c0_97 = arith.constant 0 : index
    %c0_98 = arith.constant 0 : index
    %251 = vector.load %arg18[%c0_97, %c0_98] : memref<1x1xf32, #tpu.memory_space<vmem>>, vector<1x1xf32>
    tpu.vector_store %arg18[%c0_97, %c0_98], %250 {strides = array<i32>} : memref<1x1xf32, #tpu.memory_space<vmem>>, vector<1x1xf32>,
    return
  }
}

</mosaic_0001>

<llo_original>
// kernel: bert_re_graph_forward.1
$region0: #{bert_re_graph_forward.1}
  #allocation0 [shape = 'u32[]', space=smem, size = 0x4, offset = 0x4, fixed_abs, tag = 'smem constant byte address 0x4 - core index']
  #allocation1 [shape = 'u32[144,128]{1,0:T(1,128)}', space=vmem, size = 0x12000, scoped, tag = 'internal scratch']
  #allocation2 [shape = 'f32[1,1]{1,0:T(1,128)S(1)}', space=vmem, size = 0x200, scoped, tag = 'scoped memory for bert_re_graph_forward.1']
  %s0 = inlined_call_operand.vmem [shape: s32[2,4], index: 0, kind: input, shape index: {}]
  %s1 = inlined_call_operand.vmem [shape: s32[2,1], index: 1, kind: input, shape index: {}]
  %s2 = inlined_call_operand.vmem [shape: f32[2,8,32], index: 2, kind: input, shape index: {}]
  %s3 = inlined_call_operand.vmem [shape: f32[2,5,8,8], index: 3, kind: input, shape index: {}]
  %s4 = inlined_call_operand.vmem [shape: f32[32,96], index: 4, kind: input, shape index: {}]
  %s5 = inlined_call_operand.vmem [shape: f32[32,32], index: 5, kind: input, shape index: {}]
  %s6 = inlined_call_operand.vmem [shape: f32[32,128], index: 6, kind: input, shape index: {}]
  %s7 = inlined_call_operand.vmem [shape: f32[1,128], index: 7, kind: input, shape index: {}]
  %s8 = inlined_call_operand.vmem [shape: f32[128,32], index: 8, kind: input, shape index: {}]
  %s9 = inlined_call_operand.vmem [shape: f32[1,32], index: 9, kind: input, shape index: {}]
  %s10 = inlined_call_operand.vmem [shape: f32[32,160], index: 10, kind: input, shape index: {}]
  %s11 = inlined_call_operand.vmem [shape: f32[32,32], index: 11, kind: input, shape index: {}]
  %s12 = inlined_call_operand.vmem [shape: f32[1,32], index: 12, kind: input, shape index: {}]
  %s13 = inlined_call_operand.vmem [shape: f32[1,32], index: 13, kind: input, shape index: {}]
  %s14 = inlined_call_operand.<no memory space> [shape: f32[1,1], index: 14, kind: input, shape index: {}]
  %s15 = inlined_call_operand.vmem [shape: f32[64,4], index: 15, kind: input, shape index: {}]
  %s16 = inlined_call_operand.vmem [shape: f32[1,4], index: 16, kind: input, shape index: {}]
  %s17 = inlined_call_operand.hbm [shape: f32[2,4], index: 17, kind: output, shape index: {0}]
  %s18 = inlined_call_operand.hbm [shape: f32[1,1], index: 18, kind: output, shape index: {1}]
  %19 = xla_tuple %s17, %s18
  %s20 = sld [smem:[#allocation0]]
  $region90: #{bert_re_graph_forward.1} parent=0
    _
  %s22 = ssub.s32 1, %s20
  %s23 = scalar_select 0, %s22, %s20
  %v24 = vstv %s14
  %25 = vst [vmem:[#allocation2] sm:$0x1] %v24
  $region1: #{bert_re_graph_forward.1} parent=0
    #allocation3 [shape = 'u8[1024]{0}', space=smem, size = 0x400, scoped, tag = 'input window, operand 0, single buffered']
    #allocation4 [shape = 's32[1]{0}', space=sflag, size = 0x4, scoped, tag = 'scoped memory for bert_re_graph_forward.1']
    #allocation5 [shape = 's32[1]{0}', space=sflag, size = 0x4, scoped, tag = 'scoped memory for bert_re_graph_forward.1']
    #allocation6 [shape = 'u8[1024]{0}', space=vmem, size = 0x400, scoped, tag = 'output window, operand 0, single buffered']
    #allocation7 [shape = 'u8[512]{0}', space=vmem, size = 0x400, scoped, tag = 'output window, operand 1, single buffered']
    #allocation8 [shape = 's32[1]{0}', space=sflag, size = 0x4, scoped, tag = 'scoped memory for bert_re_graph_forward.1']
    %26 = vsyncpa [#allocation5], 0
    %27 = vsyncpa [#allocation4], 0
    %28 = vsyncpa [#allocation8], 0
    // Predicated region
    $region2: #{bert_re_graph_forward.1} parent=1 // pred_check
      _
    $region3: #{bert_re_graph_forward.1} parent=1 // pred_check_branch
      %30 = sbr.rel (0) target = $region5
    $region4: #{bert_re_graph_forward.1} parent=1 // pred_region
      %s32 = ssub.s32 32, 32
      %33 = vsyncadd [#allocation5], %s32
      %s35 = sshll.u32 %s0, 4
      %s36 = int_to_ptr.vmem [resolvable:$true] %s35
      %38 = dma.vmem_to_smem %s36, 32, [#allocation3], [#allocation5]
    $region5: #{bert_re_graph_forward.1} parent=1 // pred_fallthru
      _
    // Predicated region
    $region6: #{bert_re_graph_forward.1} parent=1 // pred_check
      _
    $region7: #{bert_re_graph_forward.1} parent=1 // pred_check_branch
      %40 = sbr.rel (0) target = $region9
    $region8: #{bert_re_graph_forward.1} parent=1 // pred_region
      _
    $region9: #{bert_re_graph_forward.1} parent=1 // pred_fallthru
      _
    // Predicated region
    $region10: #{bert_re_graph_forward.1} parent=1 // pred_check
      _
    $region11: #{bert_re_graph_forward.1} parent=1 // pred_check_branch
      %42 = sbr.rel (0) target = $region13
    $region12: #{bert_re_graph_forward.1} parent=1 // pred_region
      _
    $region13: #{bert_re_graph_forward.1} parent=1 // pred_fallthru
      _
    // Predicated region
    $region14: #{bert_re_graph_forward.1} parent=1 // pred_check
      _
    $region15: #{bert_re_graph_forward.1} parent=1 // pred_check_branch
      %44 = sbr.rel (0) target = $region17
    $region16: #{bert_re_graph_forward.1} parent=1 // pred_region
      _
    $region17: #{bert_re_graph_forward.1} parent=1 // pred_fallthru
      _
    // Predicated region
    $region18: #{bert_re_graph_forward.1} parent=1 // pred_check
      _
    $region19: #{bert_re_graph_forward.1} parent=1 // pred_check_branch
      %46 = sbr.rel (0) target = $region21
    $region20: #{bert_re_graph_forward.1} parent=1 // pred_region
      _
    $region21: #{bert_re_graph_forward.1} parent=1 // pred_fallthru
      _
    // Predicated region
    $region22: #{bert_re_graph_forward.1} parent=1 // pred_check
      _
    $region23: #{bert_re_graph_forward.1} parent=1 // pred_check_branch
      %48 = sbr.rel (0) target = $region25
    $region24: #{bert_re_graph_forward.1} parent=1 // pred_region
      _
    $region25: #{bert_re_graph_forward.1} parent=1 // pred_fallthru
      _
    // Predicated region
    $region26: #{bert_re_graph_forward.1} parent=1 // pred_check
      _
    $region27: #{bert_re_graph_forward.1} parent=1 // pred_check_branch
      %50 = sbr.rel (0) target = $region29
    $region28: #{bert_re_graph_forward.1} parent=1 // pred_region
      _
    $region29: #{bert_re_graph_forward.1} parent=1 // pred_fallthru
      _
    // Predicated region
    $region30: #{bert_re_graph_forward.1} parent=1 // pred_check
      _
    $region31: #{bert_re_graph_forward.1} parent=1 // pred_check_branch
      %52 = sbr.rel (0) target = $region33
    $region32: #{bert_re_graph_forward.1} parent=1 // pred_region
      _
    $region33: #{bert_re_graph_forward.1} parent=1 // pred_fallthru
      _
    // Predicated region
    $region34: #{bert_re_graph_forward.1} parent=1 // pred_check
      _
    $region35: #{bert_re_graph_forward.1} parent=1 // pred_check_branch
      %54 = sbr.rel (0) target = $region37
    $region36: #{bert_re_graph_forward.1} parent=1 // pred_region
      _
    $region37: #{bert_re_graph_forward.1} parent=1 // pred_fallthru
      _
    // Predicated region
    $region38: #{bert_re_graph_forward.1} parent=1 // pred_check
      _
    $region39: #{bert_re_graph_forward.1} parent=1 // pred_check_branch
      %56 = sbr.rel (0) target = $region41
    $region40: #{bert_re_graph_forward.1} parent=1 // pred_region
      _
    $region41: #{bert_re_graph_forward.1} parent=1 // pred_fallthru
      _
    // Predicated region
    $region42: #{bert_re_graph_forward.1} parent=1 // pred_check
      _
    $region43: #{bert_re_graph_forward.1} parent=1 // pred_check_branch
      %58 = sbr.rel (0) target = $region45
    $region44: #{bert_re_graph_forward.1} parent=1 // pred_region
      _
    $region45: #{bert_re_graph_forward.1} parent=1 // pred_fallthru
      _
    // Predicated region
    $region46: #{bert_re_graph_forward.1} parent=1 // pred_check
      _
    $region47: #{bert_re_graph_forward.1} parent=1 // pred_check_branch
      %60 = sbr.rel (0) target = $region49
    $region48: #{bert_re_graph_forward.1} parent=1 // pred_region
      _
    $region49: #{bert_re_graph_forward.1} parent=1 // pred_fallthru
      _
    // Predicated region
    $region50: #{bert_re_graph_forward.1} parent=1 // pred_check
      _
    $region51: #{bert_re_graph_forward.1} parent=1 // pred_check_branch
      %62 = sbr.rel (0) target = $region53
    $region52: #{bert_re_graph_forward.1} parent=1 // pred_region
      _
    $region53: #{bert_re_graph_forward.1} parent=1 // pred_fallthru
      _
    // Predicated region
    $region54: #{bert_re_graph_forward.1} parent=1 // pred_check
      _
    $region55: #{bert_re_graph_forward.1} parent=1 // pred_check_branch
      %64 = sbr.rel (0) target = $region57
    $region56: #{bert_re_graph_forward.1} parent=1 // pred_region
      _
    $region57: #{bert_re_graph_forward.1} parent=1 // pred_fallthru
      _
    // Predicated region
    $region58: #{bert_re_graph_forward.1} parent=1 // pred_check
      _
    $region59: #{bert_re_graph_forward.1} parent=1 // pred_check_branch
      %66 = sbr.rel (0) target = $region61
    $region60: #{bert_re_graph_forward.1} parent=1 // pred_region
      _
    $region61: #{bert_re_graph_forward.1} parent=1 // pred_fallthru
      _
    // Predicated region
    $region62: #{bert_re_graph_forward.1} parent=1 // pred_check
      _
    $region63: #{bert_re_graph_forward.1} parent=1 // pred_check_branch
      %68 = sbr.rel (0) target = $region65
    $region64: #{bert_re_graph_forward.1} parent=1 // pred_region
      _
    $region65: #{bert_re_graph_forward.1} parent=1 // pred_fallthru
      _
    // Predicated region
    $region66: #{bert_re_graph_forward.1} parent=1 // pred_check
      _
    $region67: #{bert_re_graph_forward.1} parent=1 // pred_check_branch
      %70 = sbr.rel (0) target = $region69
    $region68: #{bert_re_graph_forward.1} parent=1 // pred_region
      _
    $region69: #{bert_re_graph_forward.1} parent=1 // pred_fallthru
      _
    // Predicated region
    $region70: #{bert_re_graph_forward.1} parent=1 // pred_check
      _
    $region71: #{bert_re_graph_forward.1} parent=1 // pred_check_branch
      %72 = sbr.rel (0) target = $region73
    $region72: #{bert_re_graph_forward.1} parent=1 // pred_region
      %73 = dma.done [#allocation5], 32
    $region73: #{bert_re_graph_forward.1} parent=1 // pred_fallthru
      _
    %74 = sfence
    %v75 = vld [vmem:[%s2] sm:$0xff]
    %v76 = vld [vmem:[%s2 + $0x8] sm:$0xff]
    %v77 = vld [vmem:[%s4] sm:$0xff]
    %v78 = vld [vmem:[%s4 + $0x8] sm:$0xff]
    %v79 = vld [vmem:[%s4 + $0x10] sm:$0xff]
    %v80 = vld [vmem:[%s4 + $0x18] sm:$0xff]
    %vm81 = vcmask 261120
    %v83 = vsel %vm81, %v75, 0
    %v86 = vsel %vm81, %v76, 0
    %88 = vmatprep.subr.mxu0 0.0
    %89 = vmatpush1.msra.mxu0 %v77
    %90 = vmatprep.subr.mxu0 0.0
    %91 = vmatpush1.msra.mxu0 %v78
    %92 = vmatprep.subr.mxu0 0.0
    %93 = vmatpush1.msra.mxu0 %v79
    %94 = vmatprep.subr.mxu0 0.0
    %95 = vmatpush1.msra.mxu0 %v80
    %96 = vmatprep.subr.mxu0 0.0
    %97 = vmatpush1.msra.mxu0 0.0
    %98 = vmatprep.subr.mxu0 0.0
    %99 = vmatpush1.msra.mxu0 0.0
    %100 = vmatprep.subr.mxu0 0.0
    %101 = vmatpush1.msra.mxu0 0.0
    %102 = vmatprep.subr.mxu0 0.0
    %103 = vmatpush1.msra.mxu0 0.0
    %104 = vmatprep.subr.mxu0 0.0
    %105 = vmatpush1.msra.mxu0 0.0
    %106 = vmatprep.subr.mxu0 0.0
    %107 = vmatpush1.msra.mxu0 0.0
    %108 = vmatprep.subr.mxu0 0.0
    %109 = vmatpush1.msra.mxu0 0.0
    %110 = vmatprep.subr.mxu0 0.0
    %111 = vmatpush1.msra.mxu0 0.0
    %112 = vmatprep.subr.mxu0 0.0
    %113 = vmatpush1.msra.mxu0 0.0
    %114 = vmatprep.subr.mxu0 0.0
    %115 = vmatpush1.msra.mxu0 0.0
    %116 = vmatprep.subr.mxu0 0.0
    %117 = vmatpush1.msra.mxu0 0.0
    %118 = vmatprep.subr.mxu0 0.0
    %119 = vmatpush1.msra.mxu0 0.0
    %120 = vmatprep.subr.mxu0 0.0
    %121 = vmatpush1.msra.mxu0 0.0
    %122 = vmatprep.subr.mxu0 0.0
    %123 = vmatpush1.msra.mxu0 0.0
    %124 = vmatprep.subr.mxu0 0.0
    %125 = vmatpush1.msra.mxu0 0.0
    %126 = vmatprep.subr.mxu0 0.0
    %127 = vmatpush1.msra.mxu0 0.0
    %128 = vmatprep.subr.mxu0 0.0
    %129 = vmatpush1.msra.mxu0 0.0
    %130 = vmatprep.subr.mxu0 0.0
    %131 = vmatpush1.msra.mxu0 0.0
    %132 = vmatprep.subr.mxu0 0.0
    %133 = vmatpush1.msra.mxu0 0.0
    %134 = vmatprep.subr.mxu0 0.0
    %135 = vmatpush1.msra.mxu0 0.0
    %136 = vmatprep.subr.mxu0 0.0
    %137 = vmatpush1.msra.mxu0 0.0
    %138 = vmatprep.subr.mxu0 0.0
    %139 = vmatpush1.msra.mxu0 0.0
    %140 = vmatprep.subr.mxu0 0.0
    %141 = vmatpush1.msra.mxu0 0.0
    %142 = vmatprep.subr.mxu0 0.0
    %143 = vmatpush1.msra.mxu0 0.0
    %144 = vmatprep.subr.mxu0 0.0
    %145 = vmatpush1.msra.mxu0 0.0
    %146 = vmatprep.subr.mxu0 0.0
    %147 = vmatpush1.msra.mxu0 0.0
    %148 = vmatprep.subr.mxu0 0.0
    %149 = vmatpush1.msra.mxu0 0.0
    %150 = vmatprep.subr.mxu0 0.0
    %151 = vmatpush1.msra.mxu0 0.0
    %152 = vmatprep.mubr.f32.mxu0 0.0
    %153 = vmatmul.mubr.f32.gmra.mrb[0].mxu0 %v83
    %v154 = vpop.f32.mrb[0].mxu0
    %v155 = vadd.f32 0.0, %v154
    %v156 = vpop.f32.mrb[0].mxu0
    %157 = vmatprep.mubr.f32.mxu0 0.0
    %158 = vmatmul.mubr.f32.gmra.mrb[0].mxu0 %v86
    %v159 = vpop.f32.mrb[0].mxu0
    %v160 = vadd.f32 0.0, %v159
    %v161 = vpop.f32.mrb[0].mxu0
    %162 = vdwg.mxu0
    %164 = vrot.lane.b32.xlu0 %v155, 96
    %v165 = vpop.permute.xlu0 %164
    %v166 = vsel %vm81, %v155, 0
    %v168 = vsel %vm81, %v165, 0
    %170 = vmatprep.subr.mxu0 0.0
    %171 = vmatpush1.xpose.msra.mxu0 %v168
    %172 = vmatprep.subr.mxu0 0.0
    %173 = vmatpush1.xpose.msra.mxu0 0.0
    %174 = vmatprep.subr.mxu0 0.0
    %175 = vmatpush1.xpose.msra.mxu0 0.0
    %176 = vmatprep.subr.mxu0 0.0
    %177 = vmatpush1.xpose.msra.mxu0 0.0
    %178 = vmatprep.subr.mxu0 0.0
    %179 = vmatpush1.xpose.msra.mxu0 0.0
    %180 = vmatprep.subr.mxu0 0.0
    %181 = vmatpush1.xpose.msra.mxu0 0.0
    %182 = vmatprep.subr.mxu0 0.0
    %183 = vmatpush1.xpose.msra.mxu0 0.0
    %184 = vmatprep.subr.mxu0 0.0
    %185 = vmatpush1.xpose.msra.mxu0 0.0
    %186 = vmatprep.subr.mxu0 0.0
    %187 = vmatpush1.xpose.msra.mxu0 0.0
    %188 = vmatprep.subr.mxu0 0.0
    %189 = vmatpush1.xpose.msra.mxu0 0.0
    %190 = vmatprep.subr.mxu0 0.0
    %191 = vmatpush1.xpose.msra.mxu0 0.0
    %192 = vmatprep.subr.mxu0 0.0
    %193 = vmatpush1.xpose.msra.mxu0 0.0
    %194 = vmatprep.subr.mxu0 0.0
    %195 = vmatpush1.xpose.msra.mxu0 0.0
    %196 = vmatprep.subr.mxu0 0.0
    %197 = vmatpush1.xpose.msra.mxu0 0.0
    %198 = vmatprep.subr.mxu0 0.0
    %199 = vmatpush1.xpose.msra.mxu0 0.0
    %200 = vmatprep.subr.mxu0 0.0
    %201 = vmatpush1.xpose.msra.mxu0 0.0
    %202 = vmatprep.subr.mxu0 0.0
    %203 = vmatpush1.xpose.msra.mxu0 0.0
    %204 = vmatprep.subr.mxu0 0.0
    %205 = vmatpush1.xpose.msra.mxu0 0.0
    %206 = vmatprep.subr.mxu0 0.0
    %207 = vmatpush1.xpose.msra.mxu0 0.0
    %208 = vmatprep.subr.mxu0 0.0
    %209 = vmatpush1.xpose.msra.mxu0 0.0
    %210 = vmatprep.subr.mxu0 0.0
    %211 = vmatpush1.xpose.msra.mxu0 0.0
    %212 = vmatprep.subr.mxu0 0.0
    %213 = vmatpush1.xpose.msra.mxu0 0.0
    %214 = vmatprep.subr.mxu0 0.0
    %215 = vmatpush1.xpose.msra.mxu0 0.0
    %216 = vmatprep.subr.mxu0 0.0
    %217 = vmatpush1.xpose.msra.mxu0 0.0
    %218 = vmatprep.subr.mxu0 0.0
    %219 = vmatpush1.xpose.msra.mxu0 0.0
    %220 = vmatprep.subr.mxu0 0.0
    %221 = vmatpush1.xpose.msra.mxu0 0.0
    %222 = vmatprep.subr.mxu0 0.0
    %223 = vmatpush1.xpose.msra.mxu0 0.0
    %224 = vmatprep.subr.mxu0 0.0
    %225 = vmatpush1.xpose.msra.mxu0 0.0
    %226 = vmatprep.subr.mxu0 0.0
    %227 = vmatpush1.xpose.msra.mxu0 0.0
    %228 = vmatprep.subr.mxu0 0.0
    %229 = vmatpush1.xpose.msra.mxu0 0.0
    %230 = vmatprep.subr.mxu0 0.0
    %231 = vmatpush1.xpose.msra.mxu0 0.0
    %232 = vmatprep.subr.mxu0 0.0
    %233 = vmatpush1.xpose.msra.mxu0 0.0
    %234 = vmatprep.mubr.f32.mxu0 0.0
    %235 = vmatmul.mubr.f32.gmra.mrb[0].mxu0 %v166
    %v236 = vpop.f32.mrb[0].mxu0
    %v237 = vadd.f32 0.0, %v236
    %v238 = vpop.f32.mrb[0].mxu0
    %239 = vdwg.mxu0
    %241 = vrot.lane.b32.xlu0 %v160, 96
    %v242 = vpop.permute.xlu0 %241
    %v243 = vsel %vm81, %v160, 0
    %v245 = vsel %vm81, %v242, 0
    %247 = vmatprep.subr.mxu0 0.0
    %248 = vmatpush1.xpose.msra.mxu0 %v245
    %249 = vmatprep.subr.mxu0 0.0
    %250 = vmatpush1.xpose.msra.mxu0 0.0
    %251 = vmatprep.subr.mxu0 0.0
    %252 = vmatpush1.xpose.msra.mxu0 0.0
    %253 = vmatprep.subr.mxu0 0.0
    %254 = vmatpush1.xpose.msra.mxu0 0.0
    %255 = vmatprep.subr.mxu0 0.0
    %256 = vmatpush1.xpose.msra.mxu0 0.0
    %257 = vmatprep.subr.mxu0 0.0
    %258 = vmatpush1.xpose.msra.mxu0 0.0
    %259 = vmatprep.subr.mxu0 0.0
    %260 = vmatpush1.xpose.msra.mxu0 0.0
    %261 = vmatprep.subr.mxu0 0.0
    %262 = vmatpush1.xpose.msra.mxu0 0.0
    %263 = vmatprep.subr.mxu0 0.0
    %264 = vmatpush1.xpose.msra.mxu0 0.0
    %265 = vmatprep.subr.mxu0 0.0
    %266 = vmatpush1.xpose.msra.mxu0 0.0
    %267 = vmatprep.subr.mxu0 0.0
    %268 = vmatpush1.xpose.msra.mxu0 0.0
    %269 = vmatprep.subr.mxu0 0.0
    %270 = vmatpush1.xpose.msra.mxu0 0.0
    %271 = vmatprep.subr.mxu0 0.0
    %272 = vmatpush1.xpose.msra.mxu0 0.0
    %273 = vmatprep.subr.mxu0 0.0
    %274 = vmatpush1.xpose.msra.mxu0 0.0
    %275 = vmatprep.subr.mxu0 0.0
    %276 = vmatpush1.xpose.msra.mxu0 0.0
    %277 = vmatprep.subr.mxu0 0.0
    %278 = vmatpush1.xpose.msra.mxu0 0.0
    %279 = vmatprep.subr.mxu0 0.0
    %280 = vmatpush1.xpose.msra.mxu0 0.0
    %281 = vmatprep.subr.mxu0 0.0
    %282 = vmatpush1.xpose.msra.mxu0 0.0
    %283 = vmatprep.subr.mxu0 0.0
    %284 = vmatpush1.xpose.msra.mxu0 0.0
    %285 = vmatprep.subr.mxu0 0.0
    %286 = vmatpush1.xpose.msra.mxu0 0.0
    %287 = vmatprep.subr.mxu0 0.0
    %288 = vmatpush1.xpose.msra.mxu0 0.0
    %289 = vmatprep.subr.mxu0 0.0
    %290 = vmatpush1.xpose.msra.mxu0 0.0
    %291 = vmatprep.subr.mxu0 0.0
    %292 = vmatpush1.xpose.msra.mxu0 0.0
    %293 = vmatprep.subr.mxu0 0.0
    %294 = vmatpush1.xpose.msra.mxu0 0.0
    %295 = vmatprep.subr.mxu0 0.0
    %296 = vmatpush1.xpose.msra.mxu0 0.0
    %297 = vmatprep.subr.mxu0 0.0
    %298 = vmatpush1.xpose.msra.mxu0 0.0
    %299 = vmatprep.subr.mxu0 0.0
    %300 = vmatpush1.xpose.msra.mxu0 0.0
    %301 = vmatprep.subr.mxu0 0.0
    %302 = vmatpush1.xpose.msra.mxu0 0.0
    %303 = vmatprep.subr.mxu0 0.0
    %304 = vmatpush1.xpose.msra.mxu0 0.0
    %305 = vmatprep.subr.mxu0 0.0
    %306 = vmatpush1.xpose.msra.mxu0 0.0
    %307 = vmatprep.subr.mxu0 0.0
    %308 = vmatpush1.xpose.msra.mxu0 0.0
    %309 = vmatprep.subr.mxu0 0.0
    %310 = vmatpush1.xpose.msra.mxu0 0.0
    %311 = vmatprep.mubr.f32.mxu0 0.0
    %312 = vmatmul.mubr.f32.gmra.mrb[0].mxu0 %v243
    %v313 = vpop.f32.mrb[0].mxu0
    %v314 = vadd.f32 0.0, %v313
    %v315 = vpop.f32.mrb[0].mxu0
    %316 = vdwg.mxu0
    %v317 = vmul.f32 %v237, 0.17677669
    %v318 = vmul.f32 %v314, 0.17677669
    %vm319 = vcmask 64512
    %v320 = vsel %vm319, %v317, -inf
    %321 = vmax.xlane.f32.xlu0 %v320
    %v322 = vpop.xlane.xlu0 %321
    %v323 = vsel %vm319, %v318, -inf
    %324 = vmax.xlane.f32.xlu0 %v323
    %v325 = vpop.xlane.xlu0 %324
    %v326 = vsub.f32 %v317, %v322
    %v327 = vsub.f32 %v318, %v325
    %v328 = vmul.f32 %v326, 1.442695
    %v329 = vpow.pop %v328
    %v330 = vmul.f32 %v327, 1.442695
    %v331 = vpow.pop %v330
    %v332 = vsel %vm319, %v329, 0.0
    %333 = vadd.xlane.f32.xlu0 %v332
    %v334 = vpop.xlane.xlu0 %333
    %v335 = vsel %vm319, %v331, 0.0
    %336 = vadd.xlane.f32.xlu0 %v335
    %v337 = vpop.xlane.xlu0 %336
    %v338 = vrcp.pop %v334
    %v339 = vrcp.pop %v337
    %v340 = vmul.f32 %v329, %v338
    %v341 = vmul.f32 %v331, %v339
    %342 = vrot.lane.b32.xlu0 %v155, 64
    %v343 = vpop.permute.xlu0 %342
    %v346 = vsel %vm319, %v340, 0
    %348 = vmatprep.subr.mxu0 0.0
    %349 = vmatpush1.msra.mxu0 %v343
    %350 = vmatprep.subr.mxu0 0.0
    %351 = vmatpush1.msra.mxu0 0.0
    %352 = vmatprep.subr.mxu0 0.0
    %353 = vmatpush1.msra.mxu0 0.0
    %354 = vmatprep.subr.mxu0 0.0
    %355 = vmatpush1.msra.mxu0 0.0
    %356 = vmatprep.subr.mxu0 0.0
    %357 = vmatpush1.msra.mxu0 0.0
    %358 = vmatprep.subr.mxu0 0.0
    %359 = vmatpush1.msra.mxu0 0.0
    %360 = vmatprep.subr.mxu0 0.0
    %361 = vmatpush1.msra.mxu0 0.0
    %362 = vmatprep.subr.mxu0 0.0
    %363 = vmatpush1.msra.mxu0 0.0
    %364 = vmatprep.subr.mxu0 0.0
    %365 = vmatpush1.msra.mxu0 0.0
    %366 = vmatprep.subr.mxu0 0.0
    %367 = vmatpush1.msra.mxu0 0.0
    %368 = vmatprep.subr.mxu0 0.0
    %369 = vmatpush1.msra.mxu0 0.0
    %370 = vmatprep.subr.mxu0 0.0
    %371 = vmatpush1.msra.mxu0 0.0
    %372 = vmatprep.subr.mxu0 0.0
    %373 = vmatpush1.msra.mxu0 0.0
    %374 = vmatprep.subr.mxu0 0.0
    %375 = vmatpush1.msra.mxu0 0.0
    %376 = vmatprep.subr.mxu0 0.0
    %377 = vmatpush1.msra.mxu0 0.0
    %378 = vmatprep.subr.mxu0 0.0
    %379 = vmatpush1.msra.mxu0 0.0
    %380 = vmatprep.subr.mxu0 0.0
    %381 = vmatpush1.msra.mxu0 0.0
    %382 = vmatprep.subr.mxu0 0.0
    %383 = vmatpush1.msra.mxu0 0.0
    %384 = vmatprep.subr.mxu0 0.0
    %385 = vmatpush1.msra.mxu0 0.0
    %386 = vmatprep.subr.mxu0 0.0
    %387 = vmatpush1.msra.mxu0 0.0
    %388 = vmatprep.subr.mxu0 0.0
    %389 = vmatpush1.msra.mxu0 0.0
    %390 = vmatprep.subr.mxu0 0.0
    %391 = vmatpush1.msra.mxu0 0.0
    %392 = vmatprep.subr.mxu0 0.0
    %393 = vmatpush1.msra.mxu0 0.0
    %394 = vmatprep.subr.mxu0 0.0
    %395 = vmatpush1.msra.mxu0 0.0
    %396 = vmatprep.subr.mxu0 0.0
    %397 = vmatpush1.msra.mxu0 0.0
    %398 = vmatprep.subr.mxu0 0.0
    %399 = vmatpush1.msra.mxu0 0.0
    %400 = vmatprep.subr.mxu0 0.0
    %401 = vmatpush1.msra.mxu0 0.0
    %402 = vmatprep.subr.mxu0 0.0
    %403 = vmatpush1.msra.mxu0 0.0
    %404 = vmatprep.subr.mxu0 0.0
    %405 = vmatpush1.msra.mxu0 0.0
    %406 = vmatprep.subr.mxu0 0.0
    %407 = vmatpush1.msra.mxu0 0.0
    %408 = vmatprep.subr.mxu0 0.0
    %409 = vmatpush1.msra.mxu0 0.0
    %410 = vmatprep.subr.mxu0 0.0
    %411 = vmatpush1.msra.mxu0 0.0
    %412 = vmatprep.mubr.f32.mxu0 0.0
    %413 = vmatmul.mubr.f32.gmra.mrb[0].mxu0 %v346
    %v414 = vpop.f32.mrb[0].mxu0
    %v415 = vadd.f32 0.0, %v414
    %v416 = vpop.f32.mrb[0].mxu0
    %417 = vdwg.mxu0
    %418 = vrot.lane.b32.xlu0 %v160, 64
    %v419 = vpop.permute.xlu0 %418
    %v422 = vsel %vm319, %v341, 0
    %424 = vmatprep.subr.mxu0 0.0
    %425 = vmatpush1.msra.mxu0 %v419
    %426 = vmatprep.subr.mxu0 0.0
    %427 = vmatpush1.msra.mxu0 0.0
    %428 = vmatprep.subr.mxu0 0.0
    %429 = vmatpush1.msra.mxu0 0.0
    %430 = vmatprep.subr.mxu0 0.0
    %431 = vmatpush1.msra.mxu0 0.0
    %432 = vmatprep.subr.mxu0 0.0
    %433 = vmatpush1.msra.mxu0 0.0
    %434 = vmatprep.subr.mxu0 0.0
    %435 = vmatpush1.msra.mxu0 0.0
    %436 = vmatprep.subr.mxu0 0.0
    %437 = vmatpush1.msra.mxu0 0.0
    %438 = vmatprep.subr.mxu0 0.0
    %439 = vmatpush1.msra.mxu0 0.0
    %440 = vmatprep.subr.mxu0 0.0
    %441 = vmatpush1.msra.mxu0 0.0
    %442 = vmatprep.subr.mxu0 0.0
    %443 = vmatpush1.msra.mxu0 0.0
    %444 = vmatprep.subr.mxu0 0.0
    %445 = vmatpush1.msra.mxu0 0.0
    %446 = vmatprep.subr.mxu0 0.0
    %447 = vmatpush1.msra.mxu0 0.0
    %448 = vmatprep.subr.mxu0 0.0
    %449 = vmatpush1.msra.mxu0 0.0
    %450 = vmatprep.subr.mxu0 0.0
    %451 = vmatpush1.msra.mxu0 0.0
    %452 = vmatprep.subr.mxu0 0.0
    %453 = vmatpush1.msra.mxu0 0.0
    %454 = vmatprep.subr.mxu0 0.0
    %455 = vmatpush1.msra.mxu0 0.0
    %456 = vmatprep.subr.mxu0 0.0
    %457 = vmatpush1.msra.mxu0 0.0
    %458 = vmatprep.subr.mxu0 0.0
    %459 = vmatpush1.msra.mxu0 0.0
    %460 = vmatprep.subr.mxu0 0.0
    %461 = vmatpush1.msra.mxu0 0.0
    %462 = vmatprep.subr.mxu0 0.0
    %463 = vmatpush1.msra.mxu0 0.0
    %464 = vmatprep.subr.mxu0 0.0
    %465 = vmatpush1.msra.mxu0 0.0
    %466 = vmatprep.subr.mxu0 0.0
    %467 = vmatpush1.msra.mxu0 0.0
    %468 = vmatprep.subr.mxu0 0.0
    %469 = vmatpush1.msra.mxu0 0.0
    %470 = vmatprep.subr.mxu0 0.0
    %471 = vmatpush1.msra.mxu0 0.0
    %472 = vmatprep.subr.mxu0 0.0
    %473 = vmatpush1.msra.mxu0 0.0
    %474 = vmatprep.subr.mxu0 0.0
    %475 = vmatpush1.msra.mxu0 0.0
    %476 = vmatprep.subr.mxu0 0.0
    %477 = vmatpush1.msra.mxu0 0.0
    %478 = vmatprep.subr.mxu0 0.0
    %479 = vmatpush1.msra.mxu0 0.0
    %480 = vmatprep.subr.mxu0 0.0
    %481 = vmatpush1.msra.mxu0 0.0
    %482 = vmatprep.subr.mxu0 0.0
    %483 = vmatpush1.msra.mxu0 0.0
    %484 = vmatprep.subr.mxu0 0.0
    %485 = vmatpush1.msra.mxu0 0.0
    %486 = vmatprep.subr.mxu0 0.0
    %487 = vmatpush1.msra.mxu0 0.0
    %488 = vmatprep.mubr.f32.mxu0 0.0
    %489 = vmatmul.mubr.f32.gmra.mrb[0].mxu0 %v422
    %v490 = vpop.f32.mrb[0].mxu0
    %v491 = vadd.f32 0.0, %v490
    %v492 = vpop.f32.mrb[0].mxu0
    %493 = vdwg.mxu0
    %v494 = vld [vmem:[%s5] sm:$0xff]
    %v495 = vld [vmem:[%s5 + $0x8] sm:$0xff]
    %v496 = vld [vmem:[%s5 + $0x10] sm:$0xff]
    %v497 = vld [vmem:[%s5 + $0x18] sm:$0xff]
    %v499 = vsel %vm81, %v415, 0
    %v502 = vsel %vm81, %v491, 0
    %504 = vmatprep.subr.mxu0 0.0
    %505 = vmatpush1.msra.mxu0 %v494
    %506 = vmatprep.subr.mxu0 0.0
    %507 = vmatpush1.msra.mxu0 %v495
    %508 = vmatprep.subr.mxu0 0.0
    %509 = vmatpush1.msra.mxu0 %v496
    %510 = vmatprep.subr.mxu0 0.0
    %511 = vmatpush1.msra.mxu0 %v497
    %512 = vmatprep.subr.mxu0 0.0
    %513 = vmatpush1.msra.mxu0 0.0
    %514 = vmatprep.subr.mxu0 0.0
    %515 = vmatpush1.msra.mxu0 0.0
    %516 = vmatprep.subr.mxu0 0.0
    %517 = vmatpush1.msra.mxu0 0.0
    %518 = vmatprep.subr.mxu0 0.0
    %519 = vmatpush1.msra.mxu0 0.0
    %520 = vmatprep.subr.mxu0 0.0
    %521 = vmatpush1.msra.mxu0 0.0
    %522 = vmatprep.subr.mxu0 0.0
    %523 = vmatpush1.msra.mxu0 0.0
    %524 = vmatprep.subr.mxu0 0.0
    %525 = vmatpush1.msra.mxu0 0.0
    %526 = vmatprep.subr.mxu0 0.0
    %527 = vmatpush1.msra.mxu0 0.0
    %528 = vmatprep.subr.mxu0 0.0
    %529 = vmatpush1.msra.mxu0 0.0
    %530 = vmatprep.subr.mxu0 0.0
    %531 = vmatpush1.msra.mxu0 0.0
    %532 = vmatprep.subr.mxu0 0.0
    %533 = vmatpush1.msra.mxu0 0.0
    %534 = vmatprep.subr.mxu0 0.0
    %535 = vmatpush1.msra.mxu0 0.0
    %536 = vmatprep.subr.mxu0 0.0
    %537 = vmatpush1.msra.mxu0 0.0
    %538 = vmatprep.subr.mxu0 0.0
    %539 = vmatpush1.msra.mxu0 0.0
    %540 = vmatprep.subr.mxu0 0.0
    %541 = vmatpush1.msra.mxu0 0.0
    %542 = vmatprep.subr.mxu0 0.0
    %543 = vmatpush1.msra.mxu0 0.0
    %544 = vmatprep.subr.mxu0 0.0
    %545 = vmatpush1.msra.mxu0 0.0
    %546 = vmatprep.subr.mxu0 0.0
    %547 = vmatpush1.msra.mxu0 0.0
    %548 = vmatprep.subr.mxu0 0.0
    %549 = vmatpush1.msra.mxu0 0.0
    %550 = vmatprep.subr.mxu0 0.0
    %551 = vmatpush1.msra.mxu0 0.0
    %552 = vmatprep.subr.mxu0 0.0
    %553 = vmatpush1.msra.mxu0 0.0
    %554 = vmatprep.subr.mxu0 0.0
    %555 = vmatpush1.msra.mxu0 0.0
    %556 = vmatprep.subr.mxu0 0.0
    %557 = vmatpush1.msra.mxu0 0.0
    %558 = vmatprep.subr.mxu0 0.0
    %559 = vmatpush1.msra.mxu0 0.0
    %560 = vmatprep.subr.mxu0 0.0
    %561 = vmatpush1.msra.mxu0 0.0
    %562 = vmatprep.subr.mxu0 0.0
    %563 = vmatpush1.msra.mxu0 0.0
    %564 = vmatprep.subr.mxu0 0.0
    %565 = vmatpush1.msra.mxu0 0.0
    %566 = vmatprep.subr.mxu0 0.0
    %567 = vmatpush1.msra.mxu0 0.0
    %568 = vmatprep.mubr.f32.mxu0 0.0
    %569 = vmatmul.mubr.f32.gmra.mrb[0].mxu0 %v499
    %v570 = vpop.f32.mrb[0].mxu0
    %v571 = vadd.f32 0.0, %v570
    %v572 = vpop.f32.mrb[0].mxu0
    %573 = vmatprep.mubr.f32.mxu0 0.0
    %574 = vmatmul.mubr.f32.gmra.mrb[0].mxu0 %v502
    %v575 = vpop.f32.mrb[0].mxu0
    %v576 = vadd.f32 0.0, %v575
    %v577 = vpop.f32.mrb[0].mxu0
    %578 = vdwg.mxu0
    %v579 = vadd.f32 %v75, %v571
    %v580 = vadd.f32 %v76, %v576
    %v581 = vld [vmem:[%s6] sm:$0xff]
    %v582 = vld [vmem:[%s6 + $0x8] sm:$0xff]
    %v583 = vld [vmem:[%s6 + $0x10] sm:$0xff]
    %v584 = vld [vmem:[%s6 + $0x18] sm:$0xff]
    %v585 = vld [vmem:[%s7] sm:$0x1]
    %v587 = vlaneseq
    %v588 = vshrl.u32 %v587, 7
    %v589 = vsub.s32 0, %v588
    %v590 = vrot.slane %v585, %v589
    %v593 = vsel %vm81, %v579, 0
    %v596 = vsel %vm81, %v580, 0
    %598 = vmatprep.subr.mxu0 0.0
    %599 = vmatpush1.msra.mxu0 %v581
    %600 = vmatprep.subr.mxu0 0.0
    %601 = vmatpush1.msra.mxu0 %v582
    %602 = vmatprep.subr.mxu0 0.0
    %603 = vmatpush1.msra.mxu0 %v583
    %604 = vmatprep.subr.mxu0 0.0
    %605 = vmatpush1.msra.mxu0 %v584
    %606 = vmatprep.subr.mxu0 0.0
    %607 = vmatpush1.msra.mxu0 0.0
    %608 = vmatprep.subr.mxu0 0.0
    %609 = vmatpush1.msra.mxu0 0.0
    %610 = vmatprep.subr.mxu0 0.0
    %611 = vmatpush1.msra.mxu0 0.0
    %612 = vmatprep.subr.mxu0 0.0
    %613 = vmatpush1.msra.mxu0 0.0
    %614 = vmatprep.subr.mxu0 0.0
    %615 = vmatpush1.msra.mxu0 0.0
    %616 = vmatprep.subr.mxu0 0.0
    %617 = vmatpush1.msra.mxu0 0.0
    %618 = vmatprep.subr.mxu0 0.0
    %619 = vmatpush1.msra.mxu0 0.0
    %620 = vmatprep.subr.mxu0 0.0
    %621 = vmatpush1.msra.mxu0 0.0
    %622 = vmatprep.subr.mxu0 0.0
    %623 = vmatpush1.msra.mxu0 0.0
    %624 = vmatprep.subr.mxu0 0.0
    %625 = vmatpush1.msra.mxu0 0.0
    %626 = vmatprep.subr.mxu0 0.0
    %627 = vmatpush1.msra.mxu0 0.0
    %628 = vmatprep.subr.mxu0 0.0
    %629 = vmatpush1.msra.mxu0 0.0
    %630 = vmatprep.subr.mxu0 0.0
    %631 = vmatpush1.msra.mxu0 0.0
    %632 = vmatprep.subr.mxu0 0.0
    %633 = vmatpush1.msra.mxu0 0.0
    %634 = vmatprep.subr.mxu0 0.0
    %635 = vmatpush1.msra.mxu0 0.0
    %636 = vmatprep.subr.mxu0 0.0
    %637 = vmatpush1.msra.mxu0 0.0
    %638 = vmatprep.subr.mxu0 0.0
    %639 = vmatpush1.msra.mxu0 0.0
    %640 = vmatprep.subr.mxu0 0.0
    %641 = vmatpush1.msra.mxu0 0.0
    %642 = vmatprep.subr.mxu0 0.0
    %643 = vmatpush1.msra.mxu0 0.0
    %644 = vmatprep.subr.mxu0 0.0
    %645 = vmatpush1.msra.mxu0 0.0
    %646 = vmatprep.subr.mxu0 0.0
    %647 = vmatpush1.msra.mxu0 0.0
    %648 = vmatprep.subr.mxu0 0.0
    %649 = vmatpush1.msra.mxu0 0.0
    %650 = vmatprep.subr.mxu0 0.0
    %651 = vmatpush1.msra.mxu0 0.0
    %652 = vmatprep.subr.mxu0 0.0
    %653 = vmatpush1.msra.mxu0 0.0
    %654 = vmatprep.subr.mxu0 0.0
    %655 = vmatpush1.msra.mxu0 0.0
    %656 = vmatprep.subr.mxu0 0.0
    %657 = vmatpush1.msra.mxu0 0.0
    %658 = vmatprep.subr.mxu0 0.0
    %659 = vmatpush1.msra.mxu0 0.0
    %660 = vmatprep.subr.mxu0 0.0
    %661 = vmatpush1.msra.mxu0 0.0
    %662 = vmatprep.mubr.f32.mxu0 0.0
    %663 = vmatmul.mubr.f32.gmra.mrb[0].mxu0 %v593
    %v664 = vpop.f32.mrb[0].mxu0
    %v665 = vadd.f32 %v590, %v664
    %v666 = vpop.f32.mrb[0].mxu0
    %667 = vmatprep.mubr.f32.mxu0 0.0
    %668 = vmatmul.mubr.f32.gmra.mrb[0].mxu0 %v596
    %v669 = vpop.f32.mrb[0].mxu0
    %v670 = vadd.f32 %v590, %v669
    %v671 = vpop.f32.mrb[0].mxu0
    %672 = vdwg.mxu0
    %v673 = vmul.f32 %v665, %v665
    %v674 = vmul.f32 %v670, %v670
    %v675 = vmul.f32 %v665, %v673
    %v676 = vmul.f32 %v670, %v674
    %v677 = vmul.f32 %v675, 0.044715
    %v678 = vmul.f32 %v676, 0.044715
    %v679 = vadd.f32 %v665, %v677
    %v680 = vadd.f32 %v670, %v678
    %v681 = vmul.f32 %v679, 0.7978846
    %v682 = vmul.f32 %v680, 0.7978846
    %v683 = vtanh.pop %v681
    %v684 = vtanh.pop %v682
    %v685 = vadd.f32 %v683, 1.0
    %v686 = vadd.f32 %v684, 1.0
    %v687 = vmul.f32 %v685, 0.5
    %v688 = vmul.f32 %v686, 0.5
    %v689 = vmul.f32 %v665, %v687
    %v690 = vmul.f32 %v670, %v688
    %v691 = vld [vmem:[%s8] sm:$0xff]
    %v692 = vld [vmem:[%s8 + $0x8] sm:$0xff]
    %v693 = vld [vmem:[%s8 + $0x10] sm:$0xff]
    %v694 = vld [vmem:[%s8 + $0x18] sm:$0xff]
    %v695 = vld [vmem:[%s8 + $0x20] sm:$0xff]
    %v696 = vld [vmem:[%s8 + $0x28] sm:$0xff]
    %v697 = vld [vmem:[%s8 + $0x30] sm:$0xff]
    %v698 = vld [vmem:[%s8 + $0x38] sm:$0xff]
    %v699 = vld [vmem:[%s8 + $0x40] sm:$0xff]
    %v700 = vld [vmem:[%s8 + $0x48] sm:$0xff]
    %v701 = vld [vmem:[%s8 + $0x50] sm:$0xff]
    %v702 = vld [vmem:[%s8 + $0x58] sm:$0xff]
    %v703 = vld [vmem:[%s8 + $0x60] sm:$0xff]
    %v704 = vld [vmem:[%s8 + $0x68] sm:$0xff]
    %v705 = vld [vmem:[%s8 + $0x70] sm:$0xff]
    %v706 = vld [vmem:[%s8 + $0x78] sm:$0xff]
    %707 = vmatprep.subr.mxu0 0.0
    %708 = vmatpush1.msra.mxu0 %v691
    %709 = vmatprep.subr.mxu0 0.0
    %710 = vmatpush1.msra.mxu0 %v692
    %711 = vmatprep.subr.mxu0 0.0
    %712 = vmatpush1.msra.mxu0 %v693
    %713 = vmatprep.subr.mxu0 0.0
    %714 = vmatpush1.msra.mxu0 %v694
    %715 = vmatprep.subr.mxu0 0.0
    %716 = vmatpush1.msra.mxu0 %v695
    %717 = vmatprep.subr.mxu0 0.0
    %718 = vmatpush1.msra.mxu0 %v696
    %719 = vmatprep.subr.mxu0 0.0
    %720 = vmatpush1.msra.mxu0 %v697
    %721 = vmatprep.subr.mxu0 0.0
    %722 = vmatpush1.msra.mxu0 %v698
    %723 = vmatprep.subr.mxu0 0.0
    %724 = vmatpush1.msra.mxu0 %v699
    %725 = vmatprep.subr.mxu0 0.0
    %726 = vmatpush1.msra.mxu0 %v700
    %727 = vmatprep.subr.mxu0 0.0
    %728 = vmatpush1.msra.mxu0 %v701
    %729 = vmatprep.subr.mxu0 0.0
    %730 = vmatpush1.msra.mxu0 %v702
    %731 = vmatprep.subr.mxu0 0.0
    %732 = vmatpush1.msra.mxu0 %v703
    %733 = vmatprep.subr.mxu0 0.0
    %734 = vmatpush1.msra.mxu0 %v704
    %735 = vmatprep.subr.mxu0 0.0
    %736 = vmatpush1.msra.mxu0 %v705
    %737 = vmatprep.subr.mxu0 0.0
    %738 = vmatpush1.msra.mxu0 %v706
    %739 = vmatprep.subr.mxu0 0.0
    %740 = vmatpush1.msra.mxu0 0.0
    %741 = vmatprep.subr.mxu0 0.0
    %742 = vmatpush1.msra.mxu0 0.0
    %743 = vmatprep.subr.mxu0 0.0
    %744 = vmatpush1.msra.mxu0 0.0
    %745 = vmatprep.subr.mxu0 0.0
    %746 = vmatpush1.msra.mxu0 0.0
    %747 = vmatprep.subr.mxu0 0.0
    %748 = vmatpush1.msra.mxu0 0.0
    %749 = vmatprep.subr.mxu0 0.0
    %750 = vmatpush1.msra.mxu0 0.0
    %751 = vmatprep.subr.mxu0 0.0
    %752 = vmatpush1.msra.mxu0 0.0
    %753 = vmatprep.subr.mxu0 0.0
    %754 = vmatpush1.msra.mxu0 0.0
    %755 = vmatprep.subr.mxu0 0.0
    %756 = vmatpush1.msra.mxu0 0.0
    %757 = vmatprep.subr.mxu0 0.0
    %758 = vmatpush1.msra.mxu0 0.0
    %759 = vmatprep.subr.mxu0 0.0
    %760 = vmatpush1.msra.mxu0 0.0
    %761 = vmatprep.subr.mxu0 0.0
    %762 = vmatpush1.msra.mxu0 0.0
    %763 = vmatprep.subr.mxu0 0.0
    %764 = vmatpush1.msra.mxu0 0.0
    %765 = vmatprep.subr.mxu0 0.0
    %766 = vmatpush1.msra.mxu0 0.0
    %767 = vmatprep.subr.mxu0 0.0
    %768 = vmatpush1.msra.mxu0 0.0
    %769 = vmatprep.subr.mxu0 0.0
    %770 = vmatpush1.msra.mxu0 0.0
    %771 = vmatprep.mubr.f32.mxu0 0.0
    %772 = vmatmul.mubr.f32.gmra.mrb[0].mxu0 %v689
    %v773 = vpop.f32.mrb[0].mxu0
    %v774 = vadd.f32 0.0, %v773
    %v775 = vpop.f32.mrb[0].mxu0
    %776 = vmatprep.mubr.f32.mxu0 0.0
    %777 = vmatmul.mubr.f32.gmra.mrb[0].mxu0 %v690
    %v778 = vpop.f32.mrb[0].mxu0
    %v779 = vadd.f32 0.0, %v778
    %v780 = vpop.f32.mrb[0].mxu0
    %781 = vdwg.mxu0
    %v782 = vadd.f32 %v579, %v774
    %v783 = vadd.f32 %v580, %v779
    %v784 = vld [vmem:[%s9] sm:$0x1]
    %v786 = vlaneseq
    %v787 = vshrl.u32 %v786, 7
    %v788 = vsub.s32 0, %v787
    %v789 = vrot.slane %v784, %v788
    %v791 = vadd.f32 %v782, %v789
    %v792 = vadd.f32 %v783, %v789
    %v793 = vld [vmem:[%s10] sm:$0xff]
    %v794 = vld [vmem:[%s10 + $0x8] sm:$0xff]
    %v795 = vld [vmem:[%s10 + $0x10] sm:$0xff]
    %v796 = vld [vmem:[%s10 + $0x18] sm:$0xff]
    %v797 = vld [vmem:[%s10 + $0x20] sm:$0xff]
    %v798 = vld [vmem:[%s10 + $0x28] sm:$0xff]
    %v799 = vld [vmem:[%s10 + $0x30] sm:$0xff]
    %v800 = vld [vmem:[%s10 + $0x38] sm:$0xff]
    %v802 = vsel %vm81, %v791, 0
    %v805 = vsel %vm81, %v792, 0
    %807 = vmatprep.subr.mxu0 %v794
    %808 = vmatpush1.msra.mxu0 %v793
    %809 = vmatprep.subr.mxu0 %v796
    %810 = vmatpush1.msra.mxu0 %v795
    %811 = vmatprep.subr.mxu0 %v798
    %812 = vmatpush1.msra.mxu0 %v797
    %813 = vmatprep.subr.mxu0 %v800
    %814 = vmatpush1.msra.mxu0 %v799
    %815 = vmatprep.subr.mxu0 0.0
    %816 = vmatpush1.msra.mxu0 0.0
    %817 = vmatprep.subr.mxu0 0.0
    %818 = vmatpush1.msra.mxu0 0.0
    %819 = vmatprep.subr.mxu0 0.0
    %820 = vmatpush1.msra.mxu0 0.0
    %821 = vmatprep.subr.mxu0 0.0
    %822 = vmatpush1.msra.mxu0 0.0
    %823 = vmatprep.subr.mxu0 0.0
    %824 = vmatpush1.msra.mxu0 0.0
    %825 = vmatprep.subr.mxu0 0.0
    %826 = vmatpush1.msra.mxu0 0.0
    %827 = vmatprep.subr.mxu0 0.0
    %828 = vmatpush1.msra.mxu0 0.0
    %829 = vmatprep.subr.mxu0 0.0
    %830 = vmatpush1.msra.mxu0 0.0
    %831 = vmatprep.subr.mxu0 0.0
    %832 = vmatpush1.msra.mxu0 0.0
    %833 = vmatprep.subr.mxu0 0.0
    %834 = vmatpush1.msra.mxu0 0.0
    %835 = vmatprep.subr.mxu0 0.0
    %836 = vmatpush1.msra.mxu0 0.0
    %837 = vmatprep.subr.mxu0 0.0
    %838 = vmatpush1.msra.mxu0 0.0
    %839 = vmatprep.subr.mxu0 0.0
    %840 = vmatpush1.msra.mxu0 0.0
    %841 = vmatprep.subr.mxu0 0.0
    %842 = vmatpush1.msra.mxu0 0.0
    %843 = vmatprep.subr.mxu0 0.0
    %844 = vmatpush1.msra.mxu0 0.0
    %845 = vmatprep.subr.mxu0 0.0
    %846 = vmatpush1.msra.mxu0 0.0
    %847 = vmatprep.subr.mxu0 0.0
    %848 = vmatpush1.msra.mxu0 0.0
    %849 = vmatprep.subr.mxu0 0.0
    %850 = vmatpush1.msra.mxu0 0.0
    %851 = vmatprep.subr.mxu0 0.0
    %852 = vmatpush1.msra.mxu0 0.0
    %853 = vmatprep.subr.mxu0 0.0
    %854 = vmatpush1.msra.mxu0 0.0
    %855 = vmatprep.subr.mxu0 0.0
    %856 = vmatpush1.msra.mxu0 0.0
    %857 = vmatprep.subr.mxu0 0.0
    %858 = vmatpush1.msra.mxu0 0.0
    %859 = vmatprep.subr.mxu0 0.0
    %860 = vmatpush1.msra.mxu0 0.0
    %861 = vmatprep.subr.mxu0 0.0
    %862 = vmatpush1.msra.mxu0 0.0
    %863 = vmatprep.subr.mxu0 0.0
    %864 = vmatpush1.msra.mxu0 0.0
    %865 = vmatprep.subr.mxu0 0.0
    %866 = vmatpush1.msra.mxu0 0.0
    %867 = vmatprep.subr.mxu0 0.0
    %868 = vmatpush1.msra.mxu0 0.0
    %869 = vmatprep.subr.mxu0 0.0
    %870 = vmatpush1.msra.mxu0 0.0
    %871 = vmatprep.mubr.f32.mxu0 0.0
    %872 = vmatmul.mubr.f32.gmra.mrb[0].mxu0 %v802
    %v873 = vpop.f32.mrb[0].mxu0
    %v874 = vadd.f32 0.0, %v873
    %v875 = vpop.f32.mrb[0].mxu0
    %v876 = vadd.f32 0.0, %v875
    %877 = vmatprep.mubr.f32.mxu0 0.0
    %878 = vmatmul.mubr.f32.gmra.mrb[0].mxu0 %v805
    %v879 = vpop.f32.mrb[0].mxu0
    %v880 = vadd.f32 0.0, %v879
    %v881 = vpop.f32.mrb[0].mxu0
    %v882 = vadd.f32 0.0, %v881
    %883 = vdwg.mxu0
    %v884 = vld [vmem:[%s11] sm:$0xff]
    %v885 = vld [vmem:[%s11 + $0x8] sm:$0xff]
    %v886 = vld [vmem:[%s11 + $0x10] sm:$0xff]
    %v887 = vld [vmem:[%s11 + $0x18] sm:$0xff]
    %888 = vmatprep.subr.mxu0 0.0
    %889 = vmatpush1.msra.mxu0 %v884
    %890 = vmatprep.subr.mxu0 0.0
    %891 = vmatpush1.msra.mxu0 %v885
    %892 = vmatprep.subr.mxu0 0.0
    %893 = vmatpush1.msra.mxu0 %v886
    %894 = vmatprep.subr.mxu0 0.0
    %895 = vmatpush1.msra.mxu0 %v887
    %896 = vmatprep.subr.mxu0 0.0
    %897 = vmatpush1.msra.mxu0 0.0
    %898 = vmatprep.subr.mxu0 0.0
    %899 = vmatpush1.msra.mxu0 0.0
    %900 = vmatprep.subr.mxu0 0.0
    %901 = vmatpush1.msra.mxu0 0.0
    %902 = vmatprep.subr.mxu0 0.0
    %903 = vmatpush1.msra.mxu0 0.0
    %904 = vmatprep.subr.mxu0 0.0
    %905 = vmatpush1.msra.mxu0 0.0
    %906 = vmatprep.subr.mxu0 0.0
    %907 = vmatpush1.msra.mxu0 0.0
    %908 = vmatprep.subr.mxu0 0.0
    %909 = vmatpush1.msra.mxu0 0.0
    %910 = vmatprep.subr.mxu0 0.0
    %911 = vmatpush1.msra.mxu0 0.0
    %912 = vmatprep.subr.mxu0 0.0
    %913 = vmatpush1.msra.mxu0 0.0
    %914 = vmatprep.subr.mxu0 0.0
    %915 = vmatpush1.msra.mxu0 0.0
    %916 = vmatprep.subr.mxu0 0.0
    %917 = vmatpush1.msra.mxu0 0.0
    %918 = vmatprep.subr.mxu0 0.0
    %919 = vmatpush1.msra.mxu0 0.0
    %920 = vmatprep.subr.mxu0 0.0
    %921 = vmatpush1.msra.mxu0 0.0
    %922 = vmatprep.subr.mxu0 0.0
    %923 = vmatpush1.msra.mxu0 0.0
    %924 = vmatprep.subr.mxu0 0.0
    %925 = vmatpush1.msra.mxu0 0.0
    %926 = vmatprep.subr.mxu0 0.0
    %927 = vmatpush1.msra.mxu0 0.0
    %928 = vmatprep.subr.mxu0 0.0
    %929 = vmatpush1.msra.mxu0 0.0
    %930 = vmatprep.subr.mxu0 0.0
    %931 = vmatpush1.msra.mxu0 0.0
    %932 = vmatprep.subr.mxu0 0.0
    %933 = vmatpush1.msra.mxu0 0.0
    %934 = vmatprep.subr.mxu0 0.0
    %935 = vmatpush1.msra.mxu0 0.0
    %936 = vmatprep.subr.mxu0 0.0
    %937 = vmatpush1.msra.mxu0 0.0
    %938 = vmatprep.subr.mxu0 0.0
    %939 = vmatpush1.msra.mxu0 0.0
    %940 = vmatprep.subr.mxu0 0.0
    %941 = vmatpush1.msra.mxu0 0.0
    %942 = vmatprep.subr.mxu0 0.0
    %943 = vmatpush1.msra.mxu0 0.0
    %944 = vmatprep.subr.mxu0 0.0
    %945 = vmatpush1.msra.mxu0 0.0
    %946 = vmatprep.subr.mxu0 0.0
    %947 = vmatpush1.msra.mxu0 0.0
    %948 = vmatprep.subr.mxu0 0.0
    %949 = vmatpush1.msra.mxu0 0.0
    %950 = vmatprep.subr.mxu0 0.0
    %951 = vmatpush1.msra.mxu0 0.0
    %952 = vmatprep.mubr.f32.mxu0 0.0
    %953 = vmatmul.mubr.f32.gmra.mrb[0].mxu0 %v802
    %v954 = vpop.f32.mrb[0].mxu0
    %v955 = vadd.f32 0.0, %v954
    %v956 = vpop.f32.mrb[0].mxu0
    %957 = vmatprep.mubr.f32.mxu0 0.0
    %958 = vmatmul.mubr.f32.gmra.mrb[0].mxu0 %v805
    %v959 = vpop.f32.mrb[0].mxu0
    %v960 = vadd.f32 0.0, %v959
    %v961 = vpop.f32.mrb[0].mxu0
    %962 = vdwg.mxu0
    %v963 = vld [vmem:[%s3] sm:$0xff]
    %v964 = vld [vmem:[%s3 + $0x8] sm:$0xff]
    %v965 = vld [vmem:[%s3 + $0x10] sm:$0xff]
    %v966 = vld [vmem:[%s3 + $0x18] sm:$0xff]
    %v967 = vld [vmem:[%s3 + $0x20] sm:$0xff]
    %v968 = vld [vmem:[%s3 + $0x28] sm:$0xff]
    %v969 = vld [vmem:[%s3 + $0x30] sm:$0xff]
    %v970 = vld [vmem:[%s3 + $0x38] sm:$0xff]
    %v971 = vld [vmem:[%s3 + $0x40] sm:$0xff]
    %v972 = vld [vmem:[%s3 + $0x48] sm:$0xff]
    %v974 = vsel %vm319, %v963, 0
    %976 = vmatprep.subr.mxu0 0.0
    %977 = vmatpush1.msra.mxu0 %v874
    %978 = vmatprep.subr.mxu0 0.0
    %979 = vmatpush1.msra.mxu0 0.0
    %980 = vmatprep.subr.mxu0 0.0
    %981 = vmatpush1.msra.mxu0 0.0
    %982 = vmatprep.subr.mxu0 0.0
    %983 = vmatpush1.msra.mxu0 0.0
    %984 = vmatprep.subr.mxu0 0.0
    %985 = vmatpush1.msra.mxu0 0.0
    %986 = vmatprep.subr.mxu0 0.0
    %987 = vmatpush1.msra.mxu0 0.0
    %988 = vmatprep.subr.mxu0 0.0
    %989 = vmatpush1.msra.mxu0 0.0
    %990 = vmatprep.subr.mxu0 0.0
    %991 = vmatpush1.msra.mxu0 0.0
    %992 = vmatprep.subr.mxu0 0.0
    %993 = vmatpush1.msra.mxu0 0.0
    %994 = vmatprep.subr.mxu0 0.0
    %995 = vmatpush1.msra.mxu0 0.0
    %996 = vmatprep.subr.mxu0 0.0
    %997 = vmatpush1.msra.mxu0 0.0
    %998 = vmatprep.subr.mxu0 0.0
    %999 = vmatpush1.msra.mxu0 0.0
    %1000 = vmatprep.subr.mxu0 0.0
    %1001 = vmatpush1.msra.mxu0 0.0
    %1002 = vmatprep.subr.mxu0 0.0
    %1003 = vmatpush1.msra.mxu0 0.0
    %1004 = vmatprep.subr.mxu0 0.0
    %1005 = vmatpush1.msra.mxu0 0.0
    %1006 = vmatprep.subr.mxu0 0.0
    %1007 = vmatpush1.msra.mxu0 0.0
    %1008 = vmatprep.subr.mxu0 0.0
    %1009 = vmatpush1.msra.mxu0 0.0
    %1010 = vmatprep.subr.mxu0 0.0
    %1011 = vmatpush1.msra.mxu0 0.0
    %1012 = vmatprep.subr.mxu0 0.0
    %1013 = vmatpush1.msra.mxu0 0.0
    %1014 = vmatprep.subr.mxu0 0.0
    %1015 = vmatpush1.msra.mxu0 0.0
    %1016 = vmatprep.subr.mxu0 0.0
    %1017 = vmatpush1.msra.mxu0 0.0
    %1018 = vmatprep.subr.mxu0 0.0
    %1019 = vmatpush1.msra.mxu0 0.0
    %1020 = vmatprep.subr.mxu0 0.0
    %1021 = vmatpush1.msra.mxu0 0.0
    %1022 = vmatprep.subr.mxu0 0.0
    %1023 = vmatpush1.msra.mxu0 0.0
    %1024 = vmatprep.subr.mxu0 0.0
    %1025 = vmatpush1.msra.mxu0 0.0
    %1026 = vmatprep.subr.mxu0 0.0
    %1027 = vmatpush1.msra.mxu0 0.0
    %1028 = vmatprep.subr.mxu0 0.0
    %1029 = vmatpush1.msra.mxu0 0.0
    %1030 = vmatprep.subr.mxu0 0.0
    %1031 = vmatpush1.msra.mxu0 0.0
    %1032 = vmatprep.subr.mxu0 0.0
    %1033 = vmatpush1.msra.mxu0 0.0
    %1034 = vmatprep.subr.mxu0 0.0
    %1035 = vmatpush1.msra.mxu0 0.0
    %1036 = vmatprep.subr.mxu0 0.0
    %1037 = vmatpush1.msra.mxu0 0.0
    %1038 = vmatprep.subr.mxu0 0.0
    %1039 = vmatpush1.msra.mxu0 0.0
    %1040 = vmatprep.mubr.f32.mxu0 0.0
    %1041 = vmatmul.mubr.f32.gmra.mrb[0].mxu0 %v974
    %v1042 = vpop.f32.mrb[0].mxu0
    %v1043 = vadd.f32 0.0, %v1042
    %v1044 = vpop.f32.mrb[0].mxu0
    %1045 = vdwg.mxu0
    %v1047 = vsel %vm319, %v968, 0
    %1049 = vmatprep.subr.mxu0 0.0
    %1050 = vmatpush1.msra.mxu0 %v880
    %1051 = vmatprep.subr.mxu0 0.0
    %1052 = vmatpush1.msra.mxu0 0.0
    %1053 = vmatprep.subr.mxu0 0.0
    %1054 = vmatpush1.msra.mxu0 0.0
    %1055 = vmatprep.subr.mxu0 0.0
    %1056 = vmatpush1.msra.mxu0 0.0
    %1057 = vmatprep.subr.mxu0 0.0
    %1058 = vmatpush1.msra.mxu0 0.0
    %1059 = vmatprep.subr.mxu0 0.0
    %1060 = vmatpush1.msra.mxu0 0.0
    %1061 = vmatprep.subr.mxu0 0.0
    %1062 = vmatpush1.msra.mxu0 0.0
    %1063 = vmatprep.subr.mxu0 0.0
    %1064 = vmatpush1.msra.mxu0 0.0
    %1065 = vmatprep.subr.mxu0 0.0
    %1066 = vmatpush1.msra.mxu0 0.0
    %1067 = vmatprep.subr.mxu0 0.0
    %1068 = vmatpush1.msra.mxu0 0.0
    %1069 = vmatprep.subr.mxu0 0.0
    %1070 = vmatpush1.msra.mxu0 0.0
    %1071 = vmatprep.subr.mxu0 0.0
    %1072 = vmatpush1.msra.mxu0 0.0
    %1073 = vmatprep.subr.mxu0 0.0
    %1074 = vmatpush1.msra.mxu0 0.0
    %1075 = vmatprep.subr.mxu0 0.0
    %1076 = vmatpush1.msra.mxu0 0.0
    %1077 = vmatprep.subr.mxu0 0.0
    %1078 = vmatpush1.msra.mxu0 0.0
    %1079 = vmatprep.subr.mxu0 0.0
    %1080 = vmatpush1.msra.mxu0 0.0
    %1081 = vmatprep.subr.mxu0 0.0
    %1082 = vmatpush1.msra.mxu0 0.0
    %1083 = vmatprep.subr.mxu0 0.0
    %1084 = vmatpush1.msra.mxu0 0.0
    %1085 = vmatprep.subr.mxu0 0.0
    %1086 = vmatpush1.msra.mxu0 0.0
    %1087 = vmatprep.subr.mxu0 0.0
    %1088 = vmatpush1.msra.mxu0 0.0
    %1089 = vmatprep.subr.mxu0 0.0
    %1090 = vmatpush1.msra.mxu0 0.0
    %1091 = vmatprep.subr.mxu0 0.0
    %1092 = vmatpush1.msra.mxu0 0.0
    %1093 = vmatprep.subr.mxu0 0.0
    %1094 = vmatpush1.msra.mxu0 0.0
    %1095 = vmatprep.subr.mxu0 0.0
    %1096 = vmatpush1.msra.mxu0 0.0
    %1097 = vmatprep.subr.mxu0 0.0
    %1098 = vmatpush1.msra.mxu0 0.0
    %1099 = vmatprep.subr.mxu0 0.0
    %1100 = vmatpush1.msra.mxu0 0.0
    %1101 = vmatprep.subr.mxu0 0.0
    %1102 = vmatpush1.msra.mxu0 0.0
    %1103 = vmatprep.subr.mxu0 0.0
    %1104 = vmatpush1.msra.mxu0 0.0
    %1105 = vmatprep.subr.mxu0 0.0
    %1106 = vmatpush1.msra.mxu0 0.0
    %1107 = vmatprep.subr.mxu0 0.0
    %1108 = vmatpush1.msra.mxu0 0.0
    %1109 = vmatprep.subr.mxu0 0.0
    %1110 = vmatpush1.msra.mxu0 0.0
    %1111 = vmatprep.subr.mxu0 0.0
    %1112 = vmatpush1.msra.mxu0 0.0
    %1113 = vmatprep.mubr.f32.mxu0 0.0
    %1114 = vmatmul.mubr.f32.gmra.mrb[0].mxu0 %v1047
    %v1115 = vpop.f32.mrb[0].mxu0
    %v1116 = vadd.f32 0.0, %v1115
    %v1117 = vpop.f32.mrb[0].mxu0
    %1118 = vdwg.mxu0
    %v1119 = vadd.f32 %v955, %v1043
    %v1120 = vadd.f32 %v960, %v1116
    %1122 = vrot.lane.b32.xlu0 %v874, 96
    %v1123 = vpop.permute.xlu0 %1122
    %v1126 = vsel %vm319, %v964, 0
    %1128 = vmatprep.subr.mxu0 0.0
    %1129 = vmatpush1.msra.mxu0 %v1123
    %1130 = vmatprep.subr.mxu0 0.0
    %1131 = vmatpush1.msra.mxu0 0.0
    %1132 = vmatprep.subr.mxu0 0.0
    %1133 = vmatpush1.msra.mxu0 0.0
    %1134 = vmatprep.subr.mxu0 0.0
    %1135 = vmatpush1.msra.mxu0 0.0
    %1136 = vmatprep.subr.mxu0 0.0
    %1137 = vmatpush1.msra.mxu0 0.0
    %1138 = vmatprep.subr.mxu0 0.0
    %1139 = vmatpush1.msra.mxu0 0.0
    %1140 = vmatprep.subr.mxu0 0.0
    %1141 = vmatpush1.msra.mxu0 0.0
    %1142 = vmatprep.subr.mxu0 0.0
    %1143 = vmatpush1.msra.mxu0 0.0
    %1144 = vmatprep.subr.mxu0 0.0
    %1145 = vmatpush1.msra.mxu0 0.0
    %1146 = vmatprep.subr.mxu0 0.0
    %1147 = vmatpush1.msra.mxu0 0.0
    %1148 = vmatprep.subr.mxu0 0.0
    %1149 = vmatpush1.msra.mxu0 0.0
    %1150 = vmatprep.subr.mxu0 0.0
    %1151 = vmatpush1.msra.mxu0 0.0
    %1152 = vmatprep.subr.mxu0 0.0
    %1153 = vmatpush1.msra.mxu0 0.0
    %1154 = vmatprep.subr.mxu0 0.0
    %1155 = vmatpush1.msra.mxu0 0.0
    %1156 = vmatprep.subr.mxu0 0.0
    %1157 = vmatpush1.msra.mxu0 0.0
    %1158 = vmatprep.subr.mxu0 0.0
    %1159 = vmatpush1.msra.mxu0 0.0
    %1160 = vmatprep.subr.mxu0 0.0
    %1161 = vmatpush1.msra.mxu0 0.0
    %1162 = vmatprep.subr.mxu0 0.0
    %1163 = vmatpush1.msra.mxu0 0.0
    %1164 = vmatprep.subr.mxu0 0.0
    %1165 = vmatpush1.msra.mxu0 0.0
    %1166 = vmatprep.subr.mxu0 0.0
    %1167 = vmatpush1.msra.mxu0 0.0
    %1168 = vmatprep.subr.mxu0 0.0
    %1169 = vmatpush1.msra.mxu0 0.0
    %1170 = vmatprep.subr.mxu0 0.0
    %1171 = vmatpush1.msra.mxu0 0.0
    %1172 = vmatprep.subr.mxu0 0.0
    %1173 = vmatpush1.msra.mxu0 0.0
    %1174 = vmatprep.subr.mxu0 0.0
    %1175 = vmatpush1.msra.mxu0 0.0
    %1176 = vmatprep.subr.mxu0 0.0
    %1177 = vmatpush1.msra.mxu0 0.0
    %1178 = vmatprep.subr.mxu0 0.0
    %1179 = vmatpush1.msra.mxu0 0.0
    %1180 = vmatprep.subr.mxu0 0.0
    %1181 = vmatpush1.msra.mxu0 0.0
    %1182 = vmatprep.subr.mxu0 0.0
    %1183 = vmatpush1.msra.mxu0 0.0
    %1184 = vmatprep.subr.mxu0 0.0
    %1185 = vmatpush1.msra.mxu0 0.0
    %1186 = vmatprep.subr.mxu0 0.0
    %1187 = vmatpush1.msra.mxu0 0.0
    %1188 = vmatprep.subr.mxu0 0.0
    %1189 = vmatpush1.msra.mxu0 0.0
    %1190 = vmatprep.subr.mxu0 0.0
    %1191 = vmatpush1.msra.mxu0 0.0
    %1192 = vmatprep.mubr.f32.mxu0 0.0
    %1193 = vmatmul.mubr.f32.gmra.mrb[0].mxu0 %v1126
    %v1194 = vpop.f32.mrb[0].mxu0
    %v1195 = vadd.f32 0.0, %v1194
    %v1196 = vpop.f32.mrb[0].mxu0
    %1197 = vdwg.mxu0
    %1199 = vrot.lane.b32.xlu0 %v880, 96
    %v1200 = vpop.permute.xlu0 %1199
    %v1203 = vsel %vm319, %v969, 0
    %1205 = vmatprep.subr.mxu0 0.0
    %1206 = vmatpush1.msra.mxu0 %v1200
    %1207 = vmatprep.subr.mxu0 0.0
    %1208 = vmatpush1.msra.mxu0 0.0
    %1209 = vmatprep.subr.mxu0 0.0
    %1210 = vmatpush1.msra.mxu0 0.0
    %1211 = vmatprep.subr.mxu0 0.0
    %1212 = vmatpush1.msra.mxu0 0.0
    %1213 = vmatprep.subr.mxu0 0.0
    %1214 = vmatpush1.msra.mxu0 0.0
    %1215 = vmatprep.subr.mxu0 0.0
    %1216 = vmatpush1.msra.mxu0 0.0
    %1217 = vmatprep.subr.mxu0 0.0
    %1218 = vmatpush1.msra.mxu0 0.0
    %1219 = vmatprep.subr.mxu0 0.0
    %1220 = vmatpush1.msra.mxu0 0.0
    %1221 = vmatprep.subr.mxu0 0.0
    %1222 = vmatpush1.msra.mxu0 0.0
    %1223 = vmatprep.subr.mxu0 0.0
    %1224 = vmatpush1.msra.mxu0 0.0
    %1225 = vmatprep.subr.mxu0 0.0
    %1226 = vmatpush1.msra.mxu0 0.0
    %1227 = vmatprep.subr.mxu0 0.0
    %1228 = vmatpush1.msra.mxu0 0.0
    %1229 = vmatprep.subr.mxu0 0.0
    %1230 = vmatpush1.msra.mxu0 0.0
    %1231 = vmatprep.subr.mxu0 0.0
    %1232 = vmatpush1.msra.mxu0 0.0
    %1233 = vmatprep.subr.mxu0 0.0
    %1234 = vmatpush1.msra.mxu0 0.0
    %1235 = vmatprep.subr.mxu0 0.0
    %1236 = vmatpush1.msra.mxu0 0.0
    %1237 = vmatprep.subr.mxu0 0.0
    %1238 = vmatpush1.msra.mxu0 0.0
    %1239 = vmatprep.subr.mxu0 0.0
    %1240 = vmatpush1.msra.mxu0 0.0
    %1241 = vmatprep.subr.mxu0 0.0
    %1242 = vmatpush1.msra.mxu0 0.0
    %1243 = vmatprep.subr.mxu0 0.0
    %1244 = vmatpush1.msra.mxu0 0.0
    %1245 = vmatprep.subr.mxu0 0.0
    %1246 = vmatpush1.msra.mxu0 0.0
    %1247 = vmatprep.subr.mxu0 0.0
    %1248 = vmatpush1.msra.mxu0 0.0
    %1249 = vmatprep.subr.mxu0 0.0
    %1250 = vmatpush1.msra.mxu0 0.0
    %1251 = vmatprep.subr.mxu0 0.0
    %1252 = vmatpush1.msra.mxu0 0.0
    %1253 = vmatprep.subr.mxu0 0.0
    %1254 = vmatpush1.msra.mxu0 0.0
    %1255 = vmatprep.subr.mxu0 0.0
    %1256 = vmatpush1.msra.mxu0 0.0
    %1257 = vmatprep.subr.mxu0 0.0
    %1258 = vmatpush1.msra.mxu0 0.0
    %1259 = vmatprep.subr.mxu0 0.0
    %1260 = vmatpush1.msra.mxu0 0.0
    %1261 = vmatprep.subr.mxu0 0.0
    %1262 = vmatpush1.msra.mxu0 0.0
    %1263 = vmatprep.subr.mxu0 0.0
    %1264 = vmatpush1.msra.mxu0 0.0
    %1265 = vmatprep.subr.mxu0 0.0
    %1266 = vmatpush1.msra.mxu0 0.0
    %1267 = vmatprep.subr.mxu0 0.0
    %1268 = vmatpush1.msra.mxu0 0.0
    %1269 = vmatprep.mubr.f32.mxu0 0.0
    %1270 = vmatmul.mubr.f32.gmra.mrb[0].mxu0 %v1203
    %v1271 = vpop.f32.mrb[0].mxu0
    %v1272 = vadd.f32 0.0, %v1271
    %v1273 = vpop.f32.mrb[0].mxu0
    %1274 = vdwg.mxu0
    %v1275 = vadd.f32 %v1119, %v1195
    %v1276 = vadd.f32 %v1120, %v1272
    %1277 = vrot.lane.b32.xlu0 %v874, 64
    %v1278 = vpop.permute.xlu0 %1277
    %v1281 = vsel %vm319, %v965, 0
    %1283 = vmatprep.subr.mxu0 0.0
    %1284 = vmatpush1.msra.mxu0 %v1278
    %1285 = vmatprep.subr.mxu0 0.0
    %1286 = vmatpush1.msra.mxu0 0.0
    %1287 = vmatprep.subr.mxu0 0.0
    %1288 = vmatpush1.msra.mxu0 0.0
    %1289 = vmatprep.subr.mxu0 0.0
    %1290 = vmatpush1.msra.mxu0 0.0
    %1291 = vmatprep.subr.mxu0 0.0
    %1292 = vmatpush1.msra.mxu0 0.0
    %1293 = vmatprep.subr.mxu0 0.0
    %1294 = vmatpush1.msra.mxu0 0.0
    %1295 = vmatprep.subr.mxu0 0.0
    %1296 = vmatpush1.msra.mxu0 0.0
    %1297 = vmatprep.subr.mxu0 0.0
    %1298 = vmatpush1.msra.mxu0 0.0
    %1299 = vmatprep.subr.mxu0 0.0
    %1300 = vmatpush1.msra.mxu0 0.0
    %1301 = vmatprep.subr.mxu0 0.0
    %1302 = vmatpush1.msra.mxu0 0.0
    %1303 = vmatprep.subr.mxu0 0.0
    %1304 = vmatpush1.msra.mxu0 0.0
    %1305 = vmatprep.subr.mxu0 0.0
    %1306 = vmatpush1.msra.mxu0 0.0
    %1307 = vmatprep.subr.mxu0 0.0
    %1308 = vmatpush1.msra.mxu0 0.0
    %1309 = vmatprep.subr.mxu0 0.0
    %1310 = vmatpush1.msra.mxu0 0.0
    %1311 = vmatprep.subr.mxu0 0.0
    %1312 = vmatpush1.msra.mxu0 0.0
    %1313 = vmatprep.subr.mxu0 0.0
    %1314 = vmatpush1.msra.mxu0 0.0
    %1315 = vmatprep.subr.mxu0 0.0
    %1316 = vmatpush1.msra.mxu0 0.0
    %1317 = vmatprep.subr.mxu0 0.0
    %1318 = vmatpush1.msra.mxu0 0.0
    %1319 = vmatprep.subr.mxu0 0.0
    %1320 = vmatpush1.msra.mxu0 0.0
    %1321 = vmatprep.subr.mxu0 0.0
    %1322 = vmatpush1.msra.mxu0 0.0
    %1323 = vmatprep.subr.mxu0 0.0
    %1324 = vmatpush1.msra.mxu0 0.0
    %1325 = vmatprep.subr.mxu0 0.0
    %1326 = vmatpush1.msra.mxu0 0.0
    %1327 = vmatprep.subr.mxu0 0.0
    %1328 = vmatpush1.msra.mxu0 0.0
    %1329 = vmatprep.subr.mxu0 0.0
    %1330 = vmatpush1.msra.mxu0 0.0
    %1331 = vmatprep.subr.mxu0 0.0
    %1332 = vmatpush1.msra.mxu0 0.0
    %1333 = vmatprep.subr.mxu0 0.0
    %1334 = vmatpush1.msra.mxu0 0.0
    %1335 = vmatprep.subr.mxu0 0.0
    %1336 = vmatpush1.msra.mxu0 0.0
    %1337 = vmatprep.subr.mxu0 0.0
    %1338 = vmatpush1.msra.mxu0 0.0
    %1339 = vmatprep.subr.mxu0 0.0
    %1340 = vmatpush1.msra.mxu0 0.0
    %1341 = vmatprep.subr.mxu0 0.0
    %1342 = vmatpush1.msra.mxu0 0.0
    %1343 = vmatprep.subr.mxu0 0.0
    %1344 = vmatpush1.msra.mxu0 0.0
    %1345 = vmatprep.subr.mxu0 0.0
    %1346 = vmatpush1.msra.mxu0 0.0
    %1347 = vmatprep.mubr.f32.mxu0 0.0
    %1348 = vmatmul.mubr.f32.gmra.mrb[0].mxu0 %v1281
    %v1349 = vpop.f32.mrb[0].mxu0
    %v1350 = vadd.f32 0.0, %v1349
    %v1351 = vpop.f32.mrb[0].mxu0
    %1352 = vdwg.mxu0
    %1353 = vrot.lane.b32.xlu0 %v880, 64
    %v1354 = vpop.permute.xlu0 %1353
    %v1357 = vsel %vm319, %v970, 0
    %1359 = vmatprep.subr.mxu0 0.0
    %1360 = vmatpush1.msra.mxu0 %v1354
    %1361 = vmatprep.subr.mxu0 0.0
    %1362 = vmatpush1.msra.mxu0 0.0
    %1363 = vmatprep.subr.mxu0 0.0
    %1364 = vmatpush1.msra.mxu0 0.0
    %1365 = vmatprep.subr.mxu0 0.0
    %1366 = vmatpush1.msra.mxu0 0.0
    %1367 = vmatprep.subr.mxu0 0.0
    %1368 = vmatpush1.msra.mxu0 0.0
    %1369 = vmatprep.subr.mxu0 0.0
    %1370 = vmatpush1.msra.mxu0 0.0
    %1371 = vmatprep.subr.mxu0 0.0
    %1372 = vmatpush1.msra.mxu0 0.0
    %1373 = vmatprep.subr.mxu0 0.0
    %1374 = vmatpush1.msra.mxu0 0.0
    %1375 = vmatprep.subr.mxu0 0.0
    %1376 = vmatpush1.msra.mxu0 0.0
    %1377 = vmatprep.subr.mxu0 0.0
    %1378 = vmatpush1.msra.mxu0 0.0
    %1379 = vmatprep.subr.mxu0 0.0
    %1380 = vmatpush1.msra.mxu0 0.0
    %1381 = vmatprep.subr.mxu0 0.0
    %1382 = vmatpush1.msra.mxu0 0.0
    %1383 = vmatprep.subr.mxu0 0.0
    %1384 = vmatpush1.msra.mxu0 0.0
    %1385 = vmatprep.subr.mxu0 0.0
    %1386 = vmatpush1.msra.mxu0 0.0
    %1387 = vmatprep.subr.mxu0 0.0
    %1388 = vmatpush1.msra.mxu0 0.0
    %1389 = vmatprep.subr.mxu0 0.0
    %1390 = vmatpush1.msra.mxu0 0.0
    %1391 = vmatprep.subr.mxu0 0.0
    %1392 = vmatpush1.msra.mxu0 0.0
    %1393 = vmatprep.subr.mxu0 0.0
    %1394 = vmatpush1.msra.mxu0 0.0
    %1395 = vmatprep.subr.mxu0 0.0
    %1396 = vmatpush1.msra.mxu0 0.0
    %1397 = vmatprep.subr.mxu0 0.0
    %1398 = vmatpush1.msra.mxu0 0.0
    %1399 = vmatprep.subr.mxu0 0.0
    %1400 = vmatpush1.msra.mxu0 0.0
    %1401 = vmatprep.subr.mxu0 0.0
    %1402 = vmatpush1.msra.mxu0 0.0
    %1403 = vmatprep.subr.mxu0 0.0
    %1404 = vmatpush1.msra.mxu0 0.0
    %1405 = vmatprep.subr.mxu0 0.0
    %1406 = vmatpush1.msra.mxu0 0.0
    %1407 = vmatprep.subr.mxu0 0.0
    %1408 = vmatpush1.msra.mxu0 0.0
    %1409 = vmatprep.subr.mxu0 0.0
    %1410 = vmatpush1.msra.mxu0 0.0
    %1411 = vmatprep.subr.mxu0 0.0
    %1412 = vmatpush1.msra.mxu0 0.0
    %1413 = vmatprep.subr.mxu0 0.0
    %1414 = vmatpush1.msra.mxu0 0.0
    %1415 = vmatprep.subr.mxu0 0.0
    %1416 = vmatpush1.msra.mxu0 0.0
    %1417 = vmatprep.subr.mxu0 0.0
    %1418 = vmatpush1.msra.mxu0 0.0
    %1419 = vmatprep.subr.mxu0 0.0
    %1420 = vmatpush1.msra.mxu0 0.0
    %1421 = vmatprep.subr.mxu0 0.0
    %1422 = vmatpush1.msra.mxu0 0.0
    %1423 = vmatprep.mubr.f32.mxu0 0.0
    %1424 = vmatmul.mubr.f32.gmra.mrb[0].mxu0 %v1357
    %v1425 = vpop.f32.mrb[0].mxu0
    %v1426 = vadd.f32 0.0, %v1425
    %v1427 = vpop.f32.mrb[0].mxu0
    %1428 = vdwg.mxu0
    %v1429 = vadd.f32 %v1275, %v1350
    %v1430 = vadd.f32 %v1276, %v1426
    %1431 = vrot.lane.b32.xlu0 %v874, 32
    %v1432 = vpop.permute.xlu0 %1431
    %v1435 = vsel %vm319, %v966, 0
    %1437 = vmatprep.subr.mxu0 0.0
    %1438 = vmatpush1.msra.mxu0 %v1432
    %1439 = vmatprep.subr.mxu0 0.0
    %1440 = vmatpush1.msra.mxu0 0.0
    %1441 = vmatprep.subr.mxu0 0.0
    %1442 = vmatpush1.msra.mxu0 0.0
    %1443 = vmatprep.subr.mxu0 0.0
    %1444 = vmatpush1.msra.mxu0 0.0
    %1445 = vmatprep.subr.mxu0 0.0
    %1446 = vmatpush1.msra.mxu0 0.0
    %1447 = vmatprep.subr.mxu0 0.0
    %1448 = vmatpush1.msra.mxu0 0.0
    %1449 = vmatprep.subr.mxu0 0.0
    %1450 = vmatpush1.msra.mxu0 0.0
    %1451 = vmatprep.subr.mxu0 0.0
    %1452 = vmatpush1.msra.mxu0 0.0
    %1453 = vmatprep.subr.mxu0 0.0
    %1454 = vmatpush1.msra.mxu0 0.0
    %1455 = vmatprep.subr.mxu0 0.0
    %1456 = vmatpush1.msra.mxu0 0.0
    %1457 = vmatprep.subr.mxu0 0.0
    %1458 = vmatpush1.msra.mxu0 0.0
    %1459 = vmatprep.subr.mxu0 0.0
    %1460 = vmatpush1.msra.mxu0 0.0
    %1461 = vmatprep.subr.mxu0 0.0
    %1462 = vmatpush1.msra.mxu0 0.0
    %1463 = vmatprep.subr.mxu0 0.0
    %1464 = vmatpush1.msra.mxu0 0.0
    %1465 = vmatprep.subr.mxu0 0.0
    %1466 = vmatpush1.msra.mxu0 0.0
    %1467 = vmatprep.subr.mxu0 0.0
    %1468 = vmatpush1.msra.mxu0 0.0
    %1469 = vmatprep.subr.mxu0 0.0
    %1470 = vmatpush1.msra.mxu0 0.0
    %1471 = vmatprep.subr.mxu0 0.0
    %1472 = vmatpush1.msra.mxu0 0.0
    %1473 = vmatprep.subr.mxu0 0.0
    %1474 = vmatpush1.msra.mxu0 0.0
    %1475 = vmatprep.subr.mxu0 0.0
    %1476 = vmatpush1.msra.mxu0 0.0
    %1477 = vmatprep.subr.mxu0 0.0
    %1478 = vmatpush1.msra.mxu0 0.0
    %1479 = vmatprep.subr.mxu0 0.0
    %1480 = vmatpush1.msra.mxu0 0.0
    %1481 = vmatprep.subr.mxu0 0.0
    %1482 = vmatpush1.msra.mxu0 0.0
    %1483 = vmatprep.subr.mxu0 0.0
    %1484 = vmatpush1.msra.mxu0 0.0
    %1485 = vmatprep.subr.mxu0 0.0
    %1486 = vmatpush1.msra.mxu0 0.0
    %1487 = vmatprep.subr.mxu0 0.0
    %1488 = vmatpush1.msra.mxu0 0.0
    %1489 = vmatprep.subr.mxu0 0.0
    %1490 = vmatpush1.msra.mxu0 0.0
    %1491 = vmatprep.subr.mxu0 0.0
    %1492 = vmatpush1.msra.mxu0 0.0
    %1493 = vmatprep.subr.mxu0 0.0
    %1494 = vmatpush1.msra.mxu0 0.0
    %1495 = vmatprep.subr.mxu0 0.0
    %1496 = vmatpush1.msra.mxu0 0.0
    %1497 = vmatprep.subr.mxu0 0.0
    %1498 = vmatpush1.msra.mxu0 0.0
    %1499 = vmatprep.subr.mxu0 0.0
    %1500 = vmatpush1.msra.mxu0 0.0
    %1501 = vmatprep.mubr.f32.mxu0 0.0
    %1502 = vmatmul.mubr.f32.gmra.mrb[0].mxu0 %v1435
    %v1503 = vpop.f32.mrb[0].mxu0
    %v1504 = vadd.f32 0.0, %v1503
    %v1505 = vpop.f32.mrb[0].mxu0
    %1506 = vdwg.mxu0
    %1507 = vrot.lane.b32.xlu0 %v880, 32
    %v1508 = vpop.permute.xlu0 %1507
    %v1511 = vsel %vm319, %v971, 0
    %1513 = vmatprep.subr.mxu0 0.0
    %1514 = vmatpush1.msra.mxu0 %v1508
    %1515 = vmatprep.subr.mxu0 0.0
    %1516 = vmatpush1.msra.mxu0 0.0
    %1517 = vmatprep.subr.mxu0 0.0
    %1518 = vmatpush1.msra.mxu0 0.0
    %1519 = vmatprep.subr.mxu0 0.0
    %1520 = vmatpush1.msra.mxu0 0.0
    %1521 = vmatprep.subr.mxu0 0.0
    %1522 = vmatpush1.msra.mxu0 0.0
    %1523 = vmatprep.subr.mxu0 0.0
    %1524 = vmatpush1.msra.mxu0 0.0
    %1525 = vmatprep.subr.mxu0 0.0
    %1526 = vmatpush1.msra.mxu0 0.0
    %1527 = vmatprep.subr.mxu0 0.0
    %1528 = vmatpush1.msra.mxu0 0.0
    %1529 = vmatprep.subr.mxu0 0.0
    %1530 = vmatpush1.msra.mxu0 0.0
    %1531 = vmatprep.subr.mxu0 0.0
    %1532 = vmatpush1.msra.mxu0 0.0
    %1533 = vmatprep.subr.mxu0 0.0
    %1534 = vmatpush1.msra.mxu0 0.0
    %1535 = vmatprep.subr.mxu0 0.0
    %1536 = vmatpush1.msra.mxu0 0.0
    %1537 = vmatprep.subr.mxu0 0.0
    %1538 = vmatpush1.msra.mxu0 0.0
    %1539 = vmatprep.subr.mxu0 0.0
    %1540 = vmatpush1.msra.mxu0 0.0
    %1541 = vmatprep.subr.mxu0 0.0
    %1542 = vmatpush1.msra.mxu0 0.0
    %1543 = vmatprep.subr.mxu0 0.0
    %1544 = vmatpush1.msra.mxu0 0.0
    %1545 = vmatprep.subr.mxu0 0.0
    %1546 = vmatpush1.msra.mxu0 0.0
    %1547 = vmatprep.subr.mxu0 0.0
    %1548 = vmatpush1.msra.mxu0 0.0
    %1549 = vmatprep.subr.mxu0 0.0
    %1550 = vmatpush1.msra.mxu0 0.0
    %1551 = vmatprep.subr.mxu0 0.0
    %1552 = vmatpush1.msra.mxu0 0.0
    %1553 = vmatprep.subr.mxu0 0.0
    %1554 = vmatpush1.msra.mxu0 0.0
    %1555 = vmatprep.subr.mxu0 0.0
    %1556 = vmatpush1.msra.mxu0 0.0
    %1557 = vmatprep.subr.mxu0 0.0
    %1558 = vmatpush1.msra.mxu0 0.0
    %1559 = vmatprep.subr.mxu0 0.0
    %1560 = vmatpush1.msra.mxu0 0.0
    %1561 = vmatprep.subr.mxu0 0.0
    %1562 = vmatpush1.msra.mxu0 0.0
    %1563 = vmatprep.subr.mxu0 0.0
    %1564 = vmatpush1.msra.mxu0 0.0
    %1565 = vmatprep.subr.mxu0 0.0
    %1566 = vmatpush1.msra.mxu0 0.0
    %1567 = vmatprep.subr.mxu0 0.0
    %1568 = vmatpush1.msra.mxu0 0.0
    %1569 = vmatprep.subr.mxu0 0.0
    %1570 = vmatpush1.msra.mxu0 0.0
    %1571 = vmatprep.subr.mxu0 0.0
    %1572 = vmatpush1.msra.mxu0 0.0
    %1573 = vmatprep.subr.mxu0 0.0
    %1574 = vmatpush1.msra.mxu0 0.0
    %1575 = vmatprep.subr.mxu0 0.0
    %1576 = vmatpush1.msra.mxu0 0.0
    %1577 = vmatprep.mubr.f32.mxu0 0.0
    %1578 = vmatmul.mubr.f32.gmra.mrb[0].mxu0 %v1511
    %v1579 = vpop.f32.mrb[0].mxu0
    %v1580 = vadd.f32 0.0, %v1579
    %v1581 = vpop.f32.mrb[0].mxu0
    %1582 = vdwg.mxu0
    %v1583 = vadd.f32 %v1429, %v1504
    %v1584 = vadd.f32 %v1430, %v1580
    %v1586 = vsel %vm319, %v967, 0
    %1588 = vmatprep.subr.mxu0 0.0
    %1589 = vmatpush1.msra.mxu0 %v876
    %1590 = vmatprep.subr.mxu0 0.0
    %1591 = vmatpush1.msra.mxu0 0.0
    %1592 = vmatprep.subr.mxu0 0.0
    %1593 = vmatpush1.msra.mxu0 0.0
    %1594 = vmatprep.subr.mxu0 0.0
    %1595 = vmatpush1.msra.mxu0 0.0
    %1596 = vmatprep.subr.mxu0 0.0
    %1597 = vmatpush1.msra.mxu0 0.0
    %1598 = vmatprep.subr.mxu0 0.0
    %1599 = vmatpush1.msra.mxu0 0.0
    %1600 = vmatprep.subr.mxu0 0.0
    %1601 = vmatpush1.msra.mxu0 0.0
    %1602 = vmatprep.subr.mxu0 0.0
    %1603 = vmatpush1.msra.mxu0 0.0
    %1604 = vmatprep.subr.mxu0 0.0
    %1605 = vmatpush1.msra.mxu0 0.0
    %1606 = vmatprep.subr.mxu0 0.0
    %1607 = vmatpush1.msra.mxu0 0.0
    %1608 = vmatprep.subr.mxu0 0.0
    %1609 = vmatpush1.msra.mxu0 0.0
    %1610 = vmatprep.subr.mxu0 0.0
    %1611 = vmatpush1.msra.mxu0 0.0
    %1612 = vmatprep.subr.mxu0 0.0
    %1613 = vmatpush1.msra.mxu0 0.0
    %1614 = vmatprep.subr.mxu0 0.0
    %1615 = vmatpush1.msra.mxu0 0.0
    %1616 = vmatprep.subr.mxu0 0.0
    %1617 = vmatpush1.msra.mxu0 0.0
    %1618 = vmatprep.subr.mxu0 0.0
    %1619 = vmatpush1.msra.mxu0 0.0
    %1620 = vmatprep.subr.mxu0 0.0
    %1621 = vmatpush1.msra.mxu0 0.0
    %1622 = vmatprep.subr.mxu0 0.0
    %1623 = vmatpush1.msra.mxu0 0.0
    %1624 = vmatprep.subr.mxu0 0.0
    %1625 = vmatpush1.msra.mxu0 0.0
    %1626 = vmatprep.subr.mxu0 0.0
    %1627 = vmatpush1.msra.mxu0 0.0
    %1628 = vmatprep.subr.mxu0 0.0
    %1629 = vmatpush1.msra.mxu0 0.0
    %1630 = vmatprep.subr.mxu0 0.0
    %1631 = vmatpush1.msra.mxu0 0.0
    %1632 = vmatprep.subr.mxu0 0.0
    %1633 = vmatpush1.msra.mxu0 0.0
    %1634 = vmatprep.subr.mxu0 0.0
    %1635 = vmatpush1.msra.mxu0 0.0
    %1636 = vmatprep.subr.mxu0 0.0
    %1637 = vmatpush1.msra.mxu0 0.0
    %1638 = vmatprep.subr.mxu0 0.0
    %1639 = vmatpush1.msra.mxu0 0.0
    %1640 = vmatprep.subr.mxu0 0.0
    %1641 = vmatpush1.msra.mxu0 0.0
    %1642 = vmatprep.subr.mxu0 0.0
    %1643 = vmatpush1.msra.mxu0 0.0
    %1644 = vmatprep.subr.mxu0 0.0
    %1645 = vmatpush1.msra.mxu0 0.0
    %1646 = vmatprep.subr.mxu0 0.0
    %1647 = vmatpush1.msra.mxu0 0.0
    %1648 = vmatprep.subr.mxu0 0.0
    %1649 = vmatpush1.msra.mxu0 0.0
    %1650 = vmatprep.subr.mxu0 0.0
    %1651 = vmatpush1.msra.mxu0 0.0
    %1652 = vmatprep.mubr.f32.mxu0 0.0
    %1653 = vmatmul.mubr.f32.gmra.mrb[0].mxu0 %v1586
    %v1654 = vpop.f32.mrb[0].mxu0
    %v1655 = vadd.f32 0.0, %v1654
    %v1656 = vpop.f32.mrb[0].mxu0
    %1657 = vdwg.mxu0
    %v1659 = vsel %vm319, %v972, 0
    %1661 = vmatprep.subr.mxu0 0.0
    %1662 = vmatpush1.msra.mxu0 %v882
    %1663 = vmatprep.subr.mxu0 0.0
    %1664 = vmatpush1.msra.mxu0 0.0
    %1665 = vmatprep.subr.mxu0 0.0
    %1666 = vmatpush1.msra.mxu0 0.0
    %1667 = vmatprep.subr.mxu0 0.0
    %1668 = vmatpush1.msra.mxu0 0.0
    %1669 = vmatprep.subr.mxu0 0.0
    %1670 = vmatpush1.msra.mxu0 0.0
    %1671 = vmatprep.subr.mxu0 0.0
    %1672 = vmatpush1.msra.mxu0 0.0
    %1673 = vmatprep.subr.mxu0 0.0
    %1674 = vmatpush1.msra.mxu0 0.0
    %1675 = vmatprep.subr.mxu0 0.0
    %1676 = vmatpush1.msra.mxu0 0.0
    %1677 = vmatprep.subr.mxu0 0.0
    %1678 = vmatpush1.msra.mxu0 0.0
    %1679 = vmatprep.subr.mxu0 0.0
    %1680 = vmatpush1.msra.mxu0 0.0
    %1681 = vmatprep.subr.mxu0 0.0
    %1682 = vmatpush1.msra.mxu0 0.0
    %1683 = vmatprep.subr.mxu0 0.0
    %1684 = vmatpush1.msra.mxu0 0.0
    %1685 = vmatprep.subr.mxu0 0.0
    %1686 = vmatpush1.msra.mxu0 0.0
    %1687 = vmatprep.subr.mxu0 0.0
    %1688 = vmatpush1.msra.mxu0 0.0
    %1689 = vmatprep.subr.mxu0 0.0
    %1690 = vmatpush1.msra.mxu0 0.0
    %1691 = vmatprep.subr.mxu0 0.0
    %1692 = vmatpush1.msra.mxu0 0.0
    %1693 = vmatprep.subr.mxu0 0.0
    %1694 = vmatpush1.msra.mxu0 0.0
    %1695 = vmatprep.subr.mxu0 0.0
    %1696 = vmatpush1.msra.mxu0 0.0
    %1697 = vmatprep.subr.mxu0 0.0
    %1698 = vmatpush1.msra.mxu0 0.0
    %1699 = vmatprep.subr.mxu0 0.0
    %1700 = vmatpush1.msra.mxu0 0.0
    %1701 = vmatprep.subr.mxu0 0.0
    %1702 = vmatpush1.msra.mxu0 0.0
    %1703 = vmatprep.subr.mxu0 0.0
    %1704 = vmatpush1.msra.mxu0 0.0
    %1705 = vmatprep.subr.mxu0 0.0
    %1706 = vmatpush1.msra.mxu0 0.0
    %1707 = vmatprep.subr.mxu0 0.0
    %1708 = vmatpush1.msra.mxu0 0.0
    %1709 = vmatprep.subr.mxu0 0.0
    %1710 = vmatpush1.msra.mxu0 0.0
    %1711 = vmatprep.subr.mxu0 0.0
    %1712 = vmatpush1.msra.mxu0 0.0
    %1713 = vmatprep.subr.mxu0 0.0
    %1714 = vmatpush1.msra.mxu0 0.0
    %1715 = vmatprep.subr.mxu0 0.0
    %1716 = vmatpush1.msra.mxu0 0.0
    %1717 = vmatprep.subr.mxu0 0.0
    %1718 = vmatpush1.msra.mxu0 0.0
    %1719 = vmatprep.subr.mxu0 0.0
    %1720 = vmatpush1.msra.mxu0 0.0
    %1721 = vmatprep.subr.mxu0 0.0
    %1722 = vmatpush1.msra.mxu0 0.0
    %1723 = vmatprep.subr.mxu0 0.0
    %1724 = vmatpush1.msra.mxu0 0.0
    %1725 = vmatprep.mubr.f32.mxu0 0.0
    %1726 = vmatmul.mubr.f32.gmra.mrb[0].mxu0 %v1659
    %v1727 = vpop.f32.mrb[0].mxu0
    %v1728 = vadd.f32 0.0, %v1727
    %v1729 = vpop.f32.mrb[0].mxu0
    %1730 = vdwg.mxu0
    %v1731 = vadd.f32 %v1583, %v1655
    %v1732 = vadd.f32 %v1584, %v1728
    %v1733 = vld [vmem:[%s12] sm:$0x1]
    %v1735 = vlaneseq
    %v1736 = vshrl.u32 %v1735, 7
    %v1737 = vsub.s32 0, %v1736
    %v1738 = vrot.slane %v1733, %v1737
    %v1740 = vadd.f32 %v1731, %v1738
    %v1741 = vadd.f32 %v1732, %v1738
    %v1742 = vmax.f32 %v1740, 0.0
    %v1743 = vmax.f32 %v1741, 0.0
    %v1744 = vadd.f32 %v791, %v1742
    %v1745 = vadd.f32 %v792, %v1743
    %v1746 = vld [vmem:[%s13] sm:$0x1]
    %v1748 = vlaneseq
    %v1749 = vshrl.u32 %v1748, 7
    %v1750 = vsub.s32 0, %v1749
    %v1751 = vrot.slane %v1746, %v1750
    %v1753 = vmul.f32 %v1744, %v1751
    %v1754 = vmul.f32 %v1745, %v1751
    %v1755 = vsel %vm81, %v1753, 0.0
    %1756 = vadd.xlane.f32.xlu0 %v1755
    %v1757 = vpop.xlane.xlu0 %1756
    %v1758 = vsel %vm81, %v1754, 0.0
    %1759 = vadd.xlane.f32.xlu0 %v1758
    %v1760 = vpop.xlane.xlu0 %1759
    %v1761 = vld [vmem:[#allocation2] sm:$0x1]
    %v1763 = vlaneseq
    %v1764 = vshrl.u32 %v1763, 7
    %v1765 = vsub.s32 0, %v1764
    %v1766 = vrot.slane %v1761, %v1765
    %1767 = vset.pattern.permute.xlu0 0
    %1768 = vperm.xlu0 %1767, %v1766
    %v1769 = vpop.permute.xlu0 %1768
    %v1771 = vadd.f32 %v1757, %v1769
    %v1772 = vadd.f32 %v1760, %v1769
    %v1773 = vlaneseq
    %v1774 = vand.u32 %v1773, 127
    %s1775 = sld [smem:[#allocation3]]
    %s1776 = sld [smem:[#allocation3 + $0x1]]
    %v1777 = vstv %s1775
    %vm1778 = vcmp.ge.s32.totalorder %v1774, %v1777
    %v1779 = vstv %s1776
    %vm1780 = vcmp.le.s32.totalorder %v1774, %v1779
    %vm1781 = vmand %vm1778, %vm1780
    %v1783 = vlaneseq
    %v1784 = vshrl.u32 %v1783, 7
    %v1785 = vsub.s32 %v1774, %v1784
    %v1786 = vrot.slane %v1771, %v1785
    %v1788 = vsel %vm1781, %v1786, -1e+09
    %vm1789 = vcmask 57344
    %v1790 = vsel %vm1789, %v1788, -inf
    %1791 = vmax.xlane.f32.xlu0 %v1790
    %v1792 = vpop.xlane.xlu0 %1791
    %v1793 = vsub.f32 %v1788, %v1792
    %v1794 = vmul.f32 %v1793, 1.442695
    %v1795 = vpow.pop %v1794
    %v1796 = vsel %vm1781, %v1795, 0.0
    %v1797 = vsel %vm1789, %v1796, 0.0
    %1798 = vadd.xlane.f32.xlu0 %v1797
    %v1799 = vpop.xlane.xlu0 %1798
    %v1800 = vrcp.pop %v1799
    %v1801 = vmul.f32 %v1796, %v1800
    %v1803 = vsel %vm319, %v1801, 0
    %1805 = vmatprep.subr.mxu0 0.0
    %1806 = vmatpush1.msra.mxu0 %v1744
    %1807 = vmatprep.subr.mxu0 0.0
    %1808 = vmatpush1.msra.mxu0 0.0
    %1809 = vmatprep.subr.mxu0 0.0
    %1810 = vmatpush1.msra.mxu0 0.0
    %1811 = vmatprep.subr.mxu0 0.0
    %1812 = vmatpush1.msra.mxu0 0.0
    %1813 = vmatprep.subr.mxu0 0.0
    %1814 = vmatpush1.msra.mxu0 0.0
    %1815 = vmatprep.subr.mxu0 0.0
    %1816 = vmatpush1.msra.mxu0 0.0
    %1817 = vmatprep.subr.mxu0 0.0
    %1818 = vmatpush1.msra.mxu0 0.0
    %1819 = vmatprep.subr.mxu0 0.0
    %1820 = vmatpush1.msra.mxu0 0.0
    %1821 = vmatprep.subr.mxu0 0.0
    %1822 = vmatpush1.msra.mxu0 0.0
    %1823 = vmatprep.subr.mxu0 0.0
    %1824 = vmatpush1.msra.mxu0 0.0
    %1825 = vmatprep.subr.mxu0 0.0
    %1826 = vmatpush1.msra.mxu0 0.0
    %1827 = vmatprep.subr.mxu0 0.0
    %1828 = vmatpush1.msra.mxu0 0.0
    %1829 = vmatprep.subr.mxu0 0.0
    %1830 = vmatpush1.msra.mxu0 0.0
    %1831 = vmatprep.subr.mxu0 0.0
    %1832 = vmatpush1.msra.mxu0 0.0
    %1833 = vmatprep.subr.mxu0 0.0
    %1834 = vmatpush1.msra.mxu0 0.0
    %1835 = vmatprep.subr.mxu0 0.0
    %1836 = vmatpush1.msra.mxu0 0.0
    %1837 = vmatprep.subr.mxu0 0.0
    %1838 = vmatpush1.msra.mxu0 0.0
    %1839 = vmatprep.subr.mxu0 0.0
    %1840 = vmatpush1.msra.mxu0 0.0
    %1841 = vmatprep.subr.mxu0 0.0
    %1842 = vmatpush1.msra.mxu0 0.0
    %1843 = vmatprep.subr.mxu0 0.0
    %1844 = vmatpush1.msra.mxu0 0.0
    %1845 = vmatprep.subr.mxu0 0.0
    %1846 = vmatpush1.msra.mxu0 0.0
    %1847 = vmatprep.subr.mxu0 0.0
    %1848 = vmatpush1.msra.mxu0 0.0
    %1849 = vmatprep.subr.mxu0 0.0
    %1850 = vmatpush1.msra.mxu0 0.0
    %1851 = vmatprep.subr.mxu0 0.0
    %1852 = vmatpush1.msra.mxu0 0.0
    %1853 = vmatprep.subr.mxu0 0.0
    %1854 = vmatpush1.msra.mxu0 0.0
    %1855 = vmatprep.subr.mxu0 0.0
    %1856 = vmatpush1.msra.mxu0 0.0
    %1857 = vmatprep.subr.mxu0 0.0
    %1858 = vmatpush1.msra.mxu0 0.0
    %1859 = vmatprep.subr.mxu0 0.0
    %1860 = vmatpush1.msra.mxu0 0.0
    %1861 = vmatprep.subr.mxu0 0.0
    %1862 = vmatpush1.msra.mxu0 0.0
    %1863 = vmatprep.subr.mxu0 0.0
    %1864 = vmatpush1.msra.mxu0 0.0
    %1865 = vmatprep.subr.mxu0 0.0
    %1866 = vmatpush1.msra.mxu0 0.0
    %1867 = vmatprep.subr.mxu0 0.0
    %1868 = vmatpush1.msra.mxu0 0.0
    %1869 = vmatprep.mubr.f32.mxu0 0.0
    %1870 = vmatmul.mubr.f32.gmra.mrb[0].mxu0 %v1803
    %v1871 = vpop.f32.mrb[0].mxu0
    %v1872 = vadd.f32 0.0, %v1871
    %v1873 = vpop.f32.mrb[0].mxu0
    %1874 = vdwg.mxu0
    %s1875 = sld [smem:[#allocation3 + $0x2]]
    %s1876 = sld [smem:[#allocation3 + $0x3]]
    %v1877 = vstv %s1875
    %vm1878 = vcmp.ge.s32.totalorder %v1774, %v1877
    %v1879 = vstv %s1876
    %vm1880 = vcmp.le.s32.totalorder %v1774, %v1879
    %vm1881 = vmand %vm1878, %vm1880
    %v1882 = vsel %vm1881, %v1786, -1e+09
    %v1883 = vsel %vm1789, %v1882, -inf
    %1884 = vmax.xlane.f32.xlu0 %v1883
    %v1885 = vpop.xlane.xlu0 %1884
    %v1886 = vsub.f32 %v1882, %v1885
    %v1887 = vmul.f32 %v1886, 1.442695
    %v1888 = vpow.pop %v1887
    %v1889 = vsel %vm1881, %v1888, 0.0
    %v1890 = vsel %vm1789, %v1889, 0.0
    %1891 = vadd.xlane.f32.xlu0 %v1890
    %v1892 = vpop.xlane.xlu0 %1891
    %v1893 = vrcp.pop %v1892
    %v1894 = vmul.f32 %v1889, %v1893
    %v1896 = vsel %vm319, %v1894, 0
    %1898 = vmatprep.subr.mxu0 0.0
    %1899 = vmatpush1.msra.mxu0 %v1744
    %1900 = vmatprep.subr.mxu0 0.0
    %1901 = vmatpush1.msra.mxu0 0.0
    %1902 = vmatprep.subr.mxu0 0.0
    %1903 = vmatpush1.msra.mxu0 0.0
    %1904 = vmatprep.subr.mxu0 0.0
    %1905 = vmatpush1.msra.mxu0 0.0
    %1906 = vmatprep.subr.mxu0 0.0
    %1907 = vmatpush1.msra.mxu0 0.0
    %1908 = vmatprep.subr.mxu0 0.0
    %1909 = vmatpush1.msra.mxu0 0.0
    %1910 = vmatprep.subr.mxu0 0.0
    %1911 = vmatpush1.msra.mxu0 0.0
    %1912 = vmatprep.subr.mxu0 0.0
    %1913 = vmatpush1.msra.mxu0 0.0
    %1914 = vmatprep.subr.mxu0 0.0
    %1915 = vmatpush1.msra.mxu0 0.0
    %1916 = vmatprep.subr.mxu0 0.0
    %1917 = vmatpush1.msra.mxu0 0.0
    %1918 = vmatprep.subr.mxu0 0.0
    %1919 = vmatpush1.msra.mxu0 0.0
    %1920 = vmatprep.subr.mxu0 0.0
    %1921 = vmatpush1.msra.mxu0 0.0
    %1922 = vmatprep.subr.mxu0 0.0
    %1923 = vmatpush1.msra.mxu0 0.0
    %1924 = vmatprep.subr.mxu0 0.0
    %1925 = vmatpush1.msra.mxu0 0.0
    %1926 = vmatprep.subr.mxu0 0.0
    %1927 = vmatpush1.msra.mxu0 0.0
    %1928 = vmatprep.subr.mxu0 0.0
    %1929 = vmatpush1.msra.mxu0 0.0
    %1930 = vmatprep.subr.mxu0 0.0
    %1931 = vmatpush1.msra.mxu0 0.0
    %1932 = vmatprep.subr.mxu0 0.0
    %1933 = vmatpush1.msra.mxu0 0.0
    %1934 = vmatprep.subr.mxu0 0.0
    %1935 = vmatpush1.msra.mxu0 0.0
    %1936 = vmatprep.subr.mxu0 0.0
    %1937 = vmatpush1.msra.mxu0 0.0
    %1938 = vmatprep.subr.mxu0 0.0
    %1939 = vmatpush1.msra.mxu0 0.0
    %1940 = vmatprep.subr.mxu0 0.0
    %1941 = vmatpush1.msra.mxu0 0.0
    %1942 = vmatprep.subr.mxu0 0.0
    %1943 = vmatpush1.msra.mxu0 0.0
    %1944 = vmatprep.subr.mxu0 0.0
    %1945 = vmatpush1.msra.mxu0 0.0
    %1946 = vmatprep.subr.mxu0 0.0
    %1947 = vmatpush1.msra.mxu0 0.0
    %1948 = vmatprep.subr.mxu0 0.0
    %1949 = vmatpush1.msra.mxu0 0.0
    %1950 = vmatprep.subr.mxu0 0.0
    %1951 = vmatpush1.msra.mxu0 0.0
    %1952 = vmatprep.subr.mxu0 0.0
    %1953 = vmatpush1.msra.mxu0 0.0
    %1954 = vmatprep.subr.mxu0 0.0
    %1955 = vmatpush1.msra.mxu0 0.0
    %1956 = vmatprep.subr.mxu0 0.0
    %1957 = vmatpush1.msra.mxu0 0.0
    %1958 = vmatprep.subr.mxu0 0.0
    %1959 = vmatpush1.msra.mxu0 0.0
    %1960 = vmatprep.subr.mxu0 0.0
    %1961 = vmatpush1.msra.mxu0 0.0
    %1962 = vmatprep.mubr.f32.mxu0 0.0
    %1963 = vmatmul.mubr.f32.gmra.mrb[0].mxu0 %v1896
    %v1964 = vpop.f32.mrb[0].mxu0
    %v1965 = vadd.f32 0.0, %v1964
    %v1966 = vpop.f32.mrb[0].mxu0
    %1967 = vdwg.mxu0
    %1969 = vrot.lane.b32.xlu0 %v1965, 32
    %v1970 = vpop.permute.xlu0 %1969
    %v1972 = vsel %vm81, %v1872, %v1970
    %s1973 = sld [smem:[#allocation3 + $0x80]]
    %s1974 = sld [smem:[#allocation3 + $0x81]]
    %v1975 = vstv %s1973
    %vm1976 = vcmp.ge.s32.totalorder %v1774, %v1975
    %v1977 = vstv %s1974
    %vm1978 = vcmp.le.s32.totalorder %v1774, %v1977
    %vm1979 = vmand %vm1976, %vm1978
    %v1981 = vlaneseq
    %v1982 = vshrl.u32 %v1981, 7
    %v1983 = vsub.s32 %v1774, %v1982
    %v1984 = vrot.slane %v1772, %v1983
    %v1986 = vsel %vm1979, %v1984, -1e+09
    %v1987 = vsel %vm1789, %v1986, -inf
    %1988 = vmax.xlane.f32.xlu0 %v1987
    %v1989 = vpop.xlane.xlu0 %1988
    %v1990 = vsub.f32 %v1986, %v1989
    %v1991 = vmul.f32 %v1990, 1.442695
    %v1992 = vpow.pop %v1991
    %v1993 = vsel %vm1979, %v1992, 0.0
    %v1994 = vsel %vm1789, %v1993, 0.0
    %1995 = vadd.xlane.f32.xlu0 %v1994
    %v1996 = vpop.xlane.xlu0 %1995
    %v1997 = vrcp.pop %v1996
    %v1998 = vmul.f32 %v1993, %v1997
    %v2000 = vsel %vm319, %v1998, 0
    %2002 = vmatprep.subr.mxu0 0.0
    %2003 = vmatpush1.msra.mxu0 %v1745
    %2004 = vmatprep.subr.mxu0 0.0
    %2005 = vmatpush1.msra.mxu0 0.0
    %2006 = vmatprep.subr.mxu0 0.0
    %2007 = vmatpush1.msra.mxu0 0.0
    %2008 = vmatprep.subr.mxu0 0.0
    %2009 = vmatpush1.msra.mxu0 0.0
    %2010 = vmatprep.subr.mxu0 0.0
    %2011 = vmatpush1.msra.mxu0 0.0
    %2012 = vmatprep.subr.mxu0 0.0
    %2013 = vmatpush1.msra.mxu0 0.0
    %2014 = vmatprep.subr.mxu0 0.0
    %2015 = vmatpush1.msra.mxu0 0.0
    %2016 = vmatprep.subr.mxu0 0.0
    %2017 = vmatpush1.msra.mxu0 0.0
    %2018 = vmatprep.subr.mxu0 0.0
    %2019 = vmatpush1.msra.mxu0 0.0
    %2020 = vmatprep.subr.mxu0 0.0
    %2021 = vmatpush1.msra.mxu0 0.0
    %2022 = vmatprep.subr.mxu0 0.0
    %2023 = vmatpush1.msra.mxu0 0.0
    %2024 = vmatprep.subr.mxu0 0.0
    %2025 = vmatpush1.msra.mxu0 0.0
    %2026 = vmatprep.subr.mxu0 0.0
    %2027 = vmatpush1.msra.mxu0 0.0
    %2028 = vmatprep.subr.mxu0 0.0
    %2029 = vmatpush1.msra.mxu0 0.0
    %2030 = vmatprep.subr.mxu0 0.0
    %2031 = vmatpush1.msra.mxu0 0.0
    %2032 = vmatprep.subr.mxu0 0.0
    %2033 = vmatpush1.msra.mxu0 0.0
    %2034 = vmatprep.subr.mxu0 0.0
    %2035 = vmatpush1.msra.mxu0 0.0
    %2036 = vmatprep.subr.mxu0 0.0
    %2037 = vmatpush1.msra.mxu0 0.0
    %2038 = vmatprep.subr.mxu0 0.0
    %2039 = vmatpush1.msra.mxu0 0.0
    %2040 = vmatprep.subr.mxu0 0.0
    %2041 = vmatpush1.msra.mxu0 0.0
    %2042 = vmatprep.subr.mxu0 0.0
    %2043 = vmatpush1.msra.mxu0 0.0
    %2044 = vmatprep.subr.mxu0 0.0
    %2045 = vmatpush1.msra.mxu0 0.0
    %2046 = vmatprep.subr.mxu0 0.0
    %2047 = vmatpush1.msra.mxu0 0.0
    %2048 = vmatprep.subr.mxu0 0.0
    %2049 = vmatpush1.msra.mxu0 0.0
    %2050 = vmatprep.subr.mxu0 0.0
    %2051 = vmatpush1.msra.mxu0 0.0
    %2052 = vmatprep.subr.mxu0 0.0
    %2053 = vmatpush1.msra.mxu0 0.0
    %2054 = vmatprep.subr.mxu0 0.0
    %2055 = vmatpush1.msra.mxu0 0.0
    %2056 = vmatprep.subr.mxu0 0.0
    %2057 = vmatpush1.msra.mxu0 0.0
    %2058 = vmatprep.subr.mxu0 0.0
    %2059 = vmatpush1.msra.mxu0 0.0
    %2060 = vmatprep.subr.mxu0 0.0
    %2061 = vmatpush1.msra.mxu0 0.0
    %2062 = vmatprep.subr.mxu0 0.0
    %2063 = vmatpush1.msra.mxu0 0.0
    %2064 = vmatprep.subr.mxu0 0.0
    %2065 = vmatpush1.msra.mxu0 0.0
    %2066 = vmatprep.mubr.f32.mxu0 0.0
    %2067 = vmatmul.mubr.f32.gmra.mrb[0].mxu0 %v2000
    %v2068 = vpop.f32.mrb[0].mxu0
    %v2069 = vadd.f32 0.0, %v2068
    %v2070 = vpop.f32.mrb[0].mxu0
    %2071 = vdwg.mxu0
    %s2072 = sld [smem:[#allocation3 + $0x82]]
    %s2073 = sld [smem:[#allocation3 + $0x83]]
    %v2074 = vstv %s2072
    %vm2075 = vcmp.ge.s32.totalorder %v1774, %v2074
    %v2076 = vstv %s2073
    %vm2077 = vcmp.le.s32.totalorder %v1774, %v2076
    %vm2078 = vmand %vm2075, %vm2077
    %v2079 = vsel %vm2078, %v1984, -1e+09
    %v2080 = vsel %vm1789, %v2079, -inf
    %2081 = vmax.xlane.f32.xlu0 %v2080
    %v2082 = vpop.xlane.xlu0 %2081
    %v2083 = vsub.f32 %v2079, %v2082
    %v2084 = vmul.f32 %v2083, 1.442695
    %v2085 = vpow.pop %v2084
    %v2086 = vsel %vm2078, %v2085, 0.0
    %v2087 = vsel %vm1789, %v2086, 0.0
    %2088 = vadd.xlane.f32.xlu0 %v2087
    %v2089 = vpop.xlane.xlu0 %2088
    %v2090 = vrcp.pop %v2089
    %v2091 = vmul.f32 %v2086, %v2090
    %v2093 = vsel %vm319, %v2091, 0
    %2095 = vmatprep.subr.mxu0 0.0
    %2096 = vmatpush1.msra.mxu0 %v1745
    %2097 = vmatprep.subr.mxu0 0.0
    %2098 = vmatpush1.msra.mxu0 0.0
    %2099 = vmatprep.subr.mxu0 0.0
    %2100 = vmatpush1.msra.mxu0 0.0
    %2101 = vmatprep.subr.mxu0 0.0
    %2102 = vmatpush1.msra.mxu0 0.0
    %2103 = vmatprep.subr.mxu0 0.0
    %2104 = vmatpush1.msra.mxu0 0.0
    %2105 = vmatprep.subr.mxu0 0.0
    %2106 = vmatpush1.msra.mxu0 0.0
    %2107 = vmatprep.subr.mxu0 0.0
    %2108 = vmatpush1.msra.mxu0 0.0
    %2109 = vmatprep.subr.mxu0 0.0
    %2110 = vmatpush1.msra.mxu0 0.0
    %2111 = vmatprep.subr.mxu0 0.0
    %2112 = vmatpush1.msra.mxu0 0.0
    %2113 = vmatprep.subr.mxu0 0.0
    %2114 = vmatpush1.msra.mxu0 0.0
    %2115 = vmatprep.subr.mxu0 0.0
    %2116 = vmatpush1.msra.mxu0 0.0
    %2117 = vmatprep.subr.mxu0 0.0
    %2118 = vmatpush1.msra.mxu0 0.0
    %2119 = vmatprep.subr.mxu0 0.0
    %2120 = vmatpush1.msra.mxu0 0.0
    %2121 = vmatprep.subr.mxu0 0.0
    %2122 = vmatpush1.msra.mxu0 0.0
    %2123 = vmatprep.subr.mxu0 0.0
    %2124 = vmatpush1.msra.mxu0 0.0
    %2125 = vmatprep.subr.mxu0 0.0
    %2126 = vmatpush1.msra.mxu0 0.0
    %2127 = vmatprep.subr.mxu0 0.0
    %2128 = vmatpush1.msra.mxu0 0.0
    %2129 = vmatprep.subr.mxu0 0.0
    %2130 = vmatpush1.msra.mxu0 0.0
    %2131 = vmatprep.subr.mxu0 0.0
    %2132 = vmatpush1.msra.mxu0 0.0
    %2133 = vmatprep.subr.mxu0 0.0
    %2134 = vmatpush1.msra.mxu0 0.0
    %2135 = vmatprep.subr.mxu0 0.0
    %2136 = vmatpush1.msra.mxu0 0.0
    %2137 = vmatprep.subr.mxu0 0.0
    %2138 = vmatpush1.msra.mxu0 0.0
    %2139 = vmatprep.subr.mxu0 0.0
    %2140 = vmatpush1.msra.mxu0 0.0
    %2141 = vmatprep.subr.mxu0 0.0
    %2142 = vmatpush1.msra.mxu0 0.0
    %2143 = vmatprep.subr.mxu0 0.0
    %2144 = vmatpush1.msra.mxu0 0.0
    %2145 = vmatprep.subr.mxu0 0.0
    %2146 = vmatpush1.msra.mxu0 0.0
    %2147 = vmatprep.subr.mxu0 0.0
    %2148 = vmatpush1.msra.mxu0 0.0
    %2149 = vmatprep.subr.mxu0 0.0
    %2150 = vmatpush1.msra.mxu0 0.0
    %2151 = vmatprep.subr.mxu0 0.0
    %2152 = vmatpush1.msra.mxu0 0.0
    %2153 = vmatprep.subr.mxu0 0.0
    %2154 = vmatpush1.msra.mxu0 0.0
    %2155 = vmatprep.subr.mxu0 0.0
    %2156 = vmatpush1.msra.mxu0 0.0
    %2157 = vmatprep.subr.mxu0 0.0
    %2158 = vmatpush1.msra.mxu0 0.0
    %2159 = vmatprep.mubr.f32.mxu0 0.0
    %2160 = vmatmul.mubr.f32.gmra.mrb[0].mxu0 %v2093
    %v2161 = vpop.f32.mrb[0].mxu0
    %v2162 = vadd.f32 0.0, %v2161
    %v2163 = vpop.f32.mrb[0].mxu0
    %2164 = vdwg.mxu0
    %2166 = vrot.lane.b32.xlu0 %v2162, 32
    %v2167 = vpop.permute.xlu0 %2166
    %v2169 = vsel %vm81, %v2069, %v2167
    %v2171 = vrot.slane %v2169, 7
    %vm2173 = vcmask 1040384
    %v2174 = vsel %vm2173, %v1972, %v2171
    %v2175 = vld [vmem:[%s15] sm:$0xff]
    %v2176 = vld [vmem:[%s15 + $0x8] sm:$0xff]
    %v2177 = vld [vmem:[%s15 + $0x10] sm:$0xff]
    %v2178 = vld [vmem:[%s15 + $0x18] sm:$0xff]
    %v2179 = vld [vmem:[%s15 + $0x20] sm:$0xff]
    %v2180 = vld [vmem:[%s15 + $0x28] sm:$0xff]
    %v2181 = vld [vmem:[%s15 + $0x30] sm:$0xff]
    %v2182 = vld [vmem:[%s15 + $0x38] sm:$0xff]
    %v2183 = vld [vmem:[%s16] sm:$0x1]
    %v2185 = vlaneseq
    %v2186 = vshrl.u32 %v2185, 7
    %v2187 = vsub.s32 0, %v2186
    %v2188 = vrot.slane %v2183, %v2187
    %vm2190 = vcmask 523264
    %v2192 = vsel %vm2190, %v2174, 0
    %2194 = vmatprep.subr.mxu0 0.0
    %2195 = vmatpush1.msra.mxu0 %v2175
    %2196 = vmatprep.subr.mxu0 0.0
    %2197 = vmatpush1.msra.mxu0 %v2176
    %2198 = vmatprep.subr.mxu0 0.0
    %2199 = vmatpush1.msra.mxu0 %v2177
    %2200 = vmatprep.subr.mxu0 0.0
    %2201 = vmatpush1.msra.mxu0 %v2178
    %2202 = vmatprep.subr.mxu0 0.0
    %2203 = vmatpush1.msra.mxu0 %v2179
    %2204 = vmatprep.subr.mxu0 0.0
    %2205 = vmatpush1.msra.mxu0 %v2180
    %2206 = vmatprep.subr.mxu0 0.0
    %2207 = vmatpush1.msra.mxu0 %v2181
    %2208 = vmatprep.subr.mxu0 0.0
    %2209 = vmatpush1.msra.mxu0 %v2182
    %2210 = vmatprep.subr.mxu0 0.0
    %2211 = vmatpush1.msra.mxu0 0.0
    %2212 = vmatprep.subr.mxu0 0.0
    %2213 = vmatpush1.msra.mxu0 0.0
    %2214 = vmatprep.subr.mxu0 0.0
    %2215 = vmatpush1.msra.mxu0 0.0
    %2216 = vmatprep.subr.mxu0 0.0
    %2217 = vmatpush1.msra.mxu0 0.0
    %2218 = vmatprep.subr.mxu0 0.0
    %2219 = vmatpush1.msra.mxu0 0.0
    %2220 = vmatprep.subr.mxu0 0.0
    %2221 = vmatpush1.msra.mxu0 0.0
    %2222 = vmatprep.subr.mxu0 0.0
    %2223 = vmatpush1.msra.mxu0 0.0
    %2224 = vmatprep.subr.mxu0 0.0
    %2225 = vmatpush1.msra.mxu0 0.0
    %2226 = vmatprep.subr.mxu0 0.0
    %2227 = vmatpush1.msra.mxu0 0.0
    %2228 = vmatprep.subr.mxu0 0.0
    %2229 = vmatpush1.msra.mxu0 0.0
    %2230 = vmatprep.subr.mxu0 0.0
    %2231 = vmatpush1.msra.mxu0 0.0
    %2232 = vmatprep.subr.mxu0 0.0
    %2233 = vmatpush1.msra.mxu0 0.0
    %2234 = vmatprep.subr.mxu0 0.0
    %2235 = vmatpush1.msra.mxu0 0.0
    %2236 = vmatprep.subr.mxu0 0.0
    %2237 = vmatpush1.msra.mxu0 0.0
    %2238 = vmatprep.subr.mxu0 0.0
    %2239 = vmatpush1.msra.mxu0 0.0
    %2240 = vmatprep.subr.mxu0 0.0
    %2241 = vmatpush1.msra.mxu0 0.0
    %2242 = vmatprep.subr.mxu0 0.0
    %2243 = vmatpush1.msra.mxu0 0.0
    %2244 = vmatprep.subr.mxu0 0.0
    %2245 = vmatpush1.msra.mxu0 0.0
    %2246 = vmatprep.subr.mxu0 0.0
    %2247 = vmatpush1.msra.mxu0 0.0
    %2248 = vmatprep.subr.mxu0 0.0
    %2249 = vmatpush1.msra.mxu0 0.0
    %2250 = vmatprep.subr.mxu0 0.0
    %2251 = vmatpush1.msra.mxu0 0.0
    %2252 = vmatprep.subr.mxu0 0.0
    %2253 = vmatpush1.msra.mxu0 0.0
    %2254 = vmatprep.subr.mxu0 0.0
    %2255 = vmatpush1.msra.mxu0 0.0
    %2256 = vmatprep.subr.mxu0 0.0
    %2257 = vmatpush1.msra.mxu0 0.0
    %2258 = vmatprep.mubr.f32.mxu0 0.0
    %2259 = vmatmul.mubr.f32.gmra.mrb[0].mxu0 %v2192
    %v2260 = vpop.f32.mrb[0].mxu0
    %v2261 = vadd.f32 %v2188, %v2260
    %v2262 = vpop.f32.mrb[0].mxu0
    %2263 = vdwg.mxu0
    %vm2264 = vcmask 25600
    %2265 = vst.msk [vmem:[#allocation6] sm:$0x3] %vm2264, %v2261
    %v2266 = vld [vmem:[%s1] sm:$0x3]
    %v2267 = vsel %vm2264, %v2261, -inf
    %2268 = vmax.xlane.f32.xlu0 %v2267
    %v2269 = vpop.xlane.xlu0 %2268
    %v2270 = vsub.f32 %v2261, %v2269
    %v2271 = vmul.f32 %v2270, 1.442695
    %v2272 = vpow.pop %v2271
    %v2273 = vsel %vm2264, %v2272, 0.0
    %2274 = vadd.xlane.f32.xlu0 %v2273
    %v2275 = vpop.xlane.xlu0 %2274
    %v2276 = vlog2.pop %v2275
    %v2277 = vmul.f32 %v2276, 0.6931472
    %v2278 = vadd.f32 %v2269, %v2277
    %2279 = vset.pattern.permute.xlu0 0
    %2280 = vperm.xlu0 %2279, %v2266
    %v2281 = vpop.permute.xlu0 %2280
    %vm2282 = vcmp.eq.s32.totalorder %v1774, %v2281
    %v2283 = vsel %vm2282, 1, 0
    %v2284 = vcvt.s32.f32 %v2283
    %v2285 = vmul.f32 %v2284, %v2261
    %v2286 = vsel %vm2264, %v2285, 0.0
    %2287 = vadd.xlane.f32.xlu0 %v2286
    %v2288 = vpop.xlane.xlu0 %2287
    %vm2289 = vcmp.ge.s32.totalorder %v2266, 0
    %v2290 = vsel %vm2289, 1, 0
    %v2291 = vcvt.s32.f32 %v2290
    %v2292 = vsub.f32 %v2278, %v2288
    %v2293 = vmul.f32 %v2292, %v2291
    %vm2294 = vcmask 1024
    %v2295 = vsel %vm2294, %v2293, 0.0
    %2296 = vadd.xlane.f32.xlu0 %v2295
    %v2297 = vpop.xlane.xlu0 %2296
    %v2298 = vrot.slane %v2297, 4
    %v2299 = vadd.f32 %v2297, %v2298
    %v2300 = vrot.slane %v2299, 2
    %v2301 = vadd.f32 %v2299, %v2300
    %v2302 = vrot.slane %v2301, 1
    %v2303 = vadd.f32 %v2301, %v2302
    %s2304 = vtos %v2303
    %v2305 = vstv %s2304
    %v2306 = vsel %vm2294, %v2291, 0.0
    %2307 = vadd.xlane.f32.xlu0 %v2306
    %v2308 = vpop.xlane.xlu0 %2307
    %v2309 = vrot.slane %v2308, 4
    %v2310 = vadd.f32 %v2308, %v2309
    %v2311 = vrot.slane %v2310, 2
    %v2312 = vadd.f32 %v2310, %v2311
    %v2313 = vrot.slane %v2312, 1
    %v2314 = vadd.f32 %v2312, %v2313
    %s2315 = vtos %v2314
    %v2316 = vstv %s2315
    %v2317 = vmax.f32 %v2316, 1.0
    %v2318 = vrcp.pop %v2317
    %v2319 = vmul.f32 %v2305, %v2318
    %vm2320 = vcmask 0
    %2321 = vst.msk [vmem:[#allocation7] sm:$0x1] %vm2320, %v2319
    // Predicated region
    $region74: #{bert_re_graph_forward.1} parent=1 // pred_check
      _
    $region75: #{bert_re_graph_forward.1} parent=1 // pred_check_branch
      %2323 = sbr.rel (0) target = $region77
    $region76: #{bert_re_graph_forward.1} parent=1 // pred_region
      %s2325 = ssub.s32 32, 32
      %2326 = vsyncadd [#allocation4], %s2325
      %s2328 = sshll.u32 [#allocation6], 4
      %s2329 = int_to_ptr.vmem [resolvable:$true] %s2328
      %2331 = dma.vmem_to_hbm [thread:$0]  %s2329, 32, %s17, [#allocation4]
    $region77: #{bert_re_graph_forward.1} parent=1 // pred_fallthru
      _
    // Predicated region
    $region78: #{bert_re_graph_forward.1} parent=1 // pred_check
      _
    $region79: #{bert_re_graph_forward.1} parent=1 // pred_check_branch
      %2333 = sbr.rel (0) target = $region81
    $region80: #{bert_re_graph_forward.1} parent=1 // pred_region
      %s2335 = ssub.s32 16, 16
      %2336 = vsyncadd [#allocation8], %s2335
      %s2338 = sshll.u32 [#allocation7], 4
      %s2339 = int_to_ptr.vmem [resolvable:$true] %s2338
      %2341 = dma.vmem_to_hbm [thread:$0]  %s2339, 16, %s18, [#allocation8]
    $region81: #{bert_re_graph_forward.1} parent=1 // pred_fallthru
      _
    // Predicated region
    $region82: #{bert_re_graph_forward.1} parent=1 // pred_check
      _
    $region83: #{bert_re_graph_forward.1} parent=1 // pred_check_branch
      %2343 = sbr.rel (0) target = $region85
    $region84: #{bert_re_graph_forward.1} parent=1 // pred_region
      %2344 = dma.done [#allocation4], 32
    $region85: #{bert_re_graph_forward.1} parent=1 // pred_fallthru
      _
    // Predicated region
    $region86: #{bert_re_graph_forward.1} parent=1 // pred_check
      _
    $region87: #{bert_re_graph_forward.1} parent=1 // pred_check_branch
      %2346 = sbr.rel (0) target = $region89
    $region88: #{bert_re_graph_forward.1} parent=1 // pred_region
      %2347 = dma.done [#allocation8], 16
    $region89: #{bert_re_graph_forward.1} parent=1 // pred_fallthru
      _
    %2348 = vsyncpa [#allocation4], 1
    %2349 = vsyncpa [#allocation8], 1
    %2350 = vsyncpa [#allocation5], 1

</llo_original>
